<compile_context>
chip_gen: v7x
topology: tpu7x:2x2x1
jax: 0.10.0
libtpu: 0.0.40
codegen_flags: <defaults>
</compile_context>

<pallas_src>
import jax
import jax.numpy as jnp
from jax.experimental import pallas as pl
from jax.experimental.pallas import tpu as pltpu

_NSEM = 8  # DMA semaphores shared round-robin by the in-flight row gathers.


def _make_gather_add_kernel(tile_rows, s_pad, num_tiles):
    """Gather `tile_rows` token rows from HBM (double buffered), add positions."""

    def kernel(ids_sref, pos_ref, tok_hbm, out_ref, tok_buf, sems):
        b = pl.program_id(0)
        t = pl.program_id(1)

        def issue(tile_idx, slot):
            # Issue all row-gather DMAs for `tile_idx` before any wait so up
            # to `tile_rows` copies are in flight (hides per-descriptor
            # latency).  Copies sharing a semaphore are always fully waited
            # on before that (slot, sem) pair is reused.
            base = b * s_pad + tile_idx * tile_rows
            for r in range(tile_rows):
                tok_id = ids_sref[base + r]
                pltpu.make_async_copy(
                    tok_hbm.at[tok_id], tok_buf.at[slot, r],
                    sems.at[slot, r % _NSEM]).start()

        # Prime: first tile of every batch row issues its own gathers.  The
        # batch axis may be split across TensorCores, so priming must not
        # depend on any earlier grid step.
        @pl.when(t == 0)
        def _():
            issue(0, 0)

        # Prefetch the next tile of the same batch row while this tile's
        # gathers drain and are consumed (manual double buffer).
        @pl.when(t + 1 < num_tiles)
        def _():
            issue(t + 1, (t + 1) % 2)

        slot = t % 2
        for r in range(tile_rows):
            pltpu.make_async_copy(
                tok_hbm.at[0], tok_buf.at[slot, r],
                sems.at[slot, r % _NSEM]).wait()

        out_ref[0] = (tok_buf[slot] + pos_ref[0]).astype(out_ref.dtype)

    return kernel


def _add_pos_kernel(x_ref, pos_ref, out_ref):
    """inputs_embeds path: plain tiled add of the position slab."""
    out_ref[...] = (x_ref[...] + pos_ref[...]).astype(out_ref.dtype)


def clip_text_embeddings(input_ids, token_table, position_table,
                         position_ids=None, inputs_embeds=None, *,
                         max_tile=128):
    """Equivalent of CLIPTextEmbeddings.forward.

    Returns token_table[input_ids] + position_table[position_ids] (or
    inputs_embeds + position_table[position_ids]) with shape (B, S, H).
    """
    P, H = position_table.shape

    if inputs_embeds is not None:
        B, S = inputs_embeds.shape[0], inputs_embeds.shape[-2]
        dtype = inputs_embeds.dtype
    else:
        B, S = input_ids.shape
        dtype = token_table.dtype

    # Position contribution as a contiguous slab.  Default position_ids is
    # arange(S) -> position_table[:S]; explicit position_ids of shape (1, S)
    # or (B, S) are gathered in the wrapper (tiny: at most B*S rows).
    if position_ids is None:
        pos = position_table[:S][None]                       # (1, S, H)
    else:
        pids = jnp.asarray(position_ids, jnp.int32).reshape(-1, S)
        pos = jnp.take(position_table, pids.reshape(-1), axis=0)
        pos = pos.reshape(pids.shape[0], S, H)               # (1 or B, S, H)
    pos = pos.astype(dtype)
    Bp = pos.shape[0]

    # Tile size: multiple of 8 (sublane-dense), capped at max_tile; S is
    # padded to an exact multiple (padded rows sliced off at the end).
    max_tile = max(8, (max_tile // 8) * 8)
    T = min(max_tile, 8 * pl.cdiv(S, 8))
    S_pad = T * pl.cdiv(S, T)
    pad = S_pad - S
    num_tiles = S_pad // T
    if pad:
        pos = jnp.pad(pos, ((0, 0), (0, pad), (0, 0)))

    if Bp == 1:
        pos_map = lambda b, t, *_: (0, t, 0)
    else:
        pos_map = lambda b, t, *_: (b, t, 0)

    if inputs_embeds is not None:
        x = inputs_embeds.astype(dtype)
        if pad:
            x = jnp.pad(x, ((0, 0), (0, pad), (0, 0)))
        out = pl.pallas_call(
            _add_pos_kernel,
            out_shape=jax.ShapeDtypeStruct((B, S_pad, H), dtype),
            grid=(B, num_tiles),
            in_specs=[pl.BlockSpec((1, T, H), lambda b, t: (b, t, 0)),
                      pl.BlockSpec((1, T, H), pos_map)],
            out_specs=pl.BlockSpec((1, T, H), lambda b, t: (b, t, 0)),
            compiler_params=pltpu.CompilerParams(
                dimension_semantics=("parallel", "parallel")),
        )(x, pos)
        return out[:, :S, :]

    V, _ = token_table.shape
    ids = jnp.clip(input_ids.astype(jnp.int32), 0, V - 1)   # guard OOB gathers
    if pad:
        ids = jnp.pad(ids, ((0, 0), (0, pad)))
    ids_flat = ids.reshape(-1)                               # (B*S_pad,) -> SMEM

    grid_spec = pltpu.PrefetchScalarGridSpec(
        num_scalar_prefetch=1,                               # ids_flat in SMEM
        grid=(B, num_tiles),
        in_specs=[
            # Position slab tile: normal pipelined VMEM input.
            pl.BlockSpec((1, T, H), pos_map),
            # Token table stays in HBM; rows are gathered manually.
            pl.BlockSpec(memory_space=pl.ANY),
        ],
        out_specs=pl.BlockSpec((1, T, H), lambda b, t, ids: (b, t, 0)),
        scratch_shapes=[
            pltpu.VMEM((2, T, H), dtype),                    # DMA double buffer
            pltpu.SemaphoreType.DMA((2, _NSEM)),             # per-slot sems
        ],
    )

    out = pl.pallas_call(
        _make_gather_add_kernel(T, S_pad, num_tiles),
        out_shape=jax.ShapeDtypeStruct((B, S_pad, H), dtype),
        grid_spec=grid_spec,
        compiler_params=pltpu.CompilerParams(
            # Batch is independent (megacore); tile axis carries the DMA
            # double buffer -> "arbitrary".
            dimension_semantics=("parallel", "arbitrary")),
    )(ids_flat, pos, token_table)

    return out[:, :S, :]


if __name__ == "__main__":
    # Small shapes consistent with the module (synthetic, deterministic init).
    token_size = 1024          # stand-in for 49408
    hidden_size = 128          # stand-in for 512 (lane-dense)
    max_position_embedding = 77
    batch, seq = 2, 8

    key = jax.random.PRNGKey(0)
    k_tok, k_pos, k_ids, k_emb = jax.random.split(key, 4)

    # nn.Embedding default init: N(0, 1)
    token_table = jax.random.normal(
        k_tok, (token_size, hidden_size), dtype=jnp.float32)
    position_table = jax.random.normal(
        k_pos, (max_position_embedding, hidden_size), dtype=jnp.float32)

    input_ids = jax.random.randint(
        k_ids, (batch, seq), minval=0, maxval=token_size, dtype=jnp.int32)

    out = jax.block_until_ready(
        clip_text_embeddings(input_ids, token_table, position_table))
    ref = jnp.take(token_table, input_ids, axis=0) + \
        position_table[None, :seq, :]
    assert out.shape == (batch, seq, hidden_size)
    assert out.dtype == jnp.float32
    assert jnp.allclose(out, ref, atol=1e-6, rtol=1e-6)

    # Sequence length not a multiple of 8: exercises the padding / tail path.
    seq2 = 13
    ids2 = jax.random.randint(
        jax.random.PRNGKey(1), (batch, seq2), 0, token_size, dtype=jnp.int32)
    out2 = jax.block_until_ready(
        clip_text_embeddings(ids2, token_table, position_table))
    ref2 = jnp.take(token_table, ids2, axis=0) + \
        position_table[None, :seq2, :]
    assert out2.shape == (batch, seq2, hidden_size)
    assert jnp.allclose(out2, ref2, atol=1e-6, rtol=1e-6)

    # Multiple tiles per batch row: exercises the cross-tile DMA double buffer.
    seq3 = 40
    ids3 = jax.random.randint(
        jax.random.PRNGKey(2), (batch, seq3), 0, token_size, dtype=jnp.int32)
    out3 = jax.block_until_ready(
        clip_text_embeddings(ids3, token_table, position_table, max_tile=16))
    ref3 = jnp.take(token_table, ids3, axis=0) + \
        position_table[None, :seq3, :]
    assert jnp.allclose(out3, ref3, atol=1e-6, rtol=1e-6)

    # inputs_embeds path (token gather skipped, only the position add).
    embeds = jax.random.normal(
        k_emb, (batch, seq, hidden_size), dtype=jnp.float32)
    out4 = jax.block_until_ready(
        clip_text_embeddings(None, token_table, position_table,
                             inputs_embeds=embeds))
    ref4 = embeds + position_table[None, :seq, :]
    assert jnp.allclose(out4, ref4, atol=1e-6, rtol=1e-6)

    print("KERNEL_OK")
</pallas_src>

<mosaic_0001>
module attributes {stable_mosaic.version = 11 : i64} {
  func.func @kernel(%arg0: i32, %arg1: i32, %arg2: memref<16xi32, #tpu.memory_space<smem>>, %arg3: memref<1x8x128xf32, #tpu.memory_space<vmem>>, %arg4: memref<1024x128xf32, #tpu.memory_space<any>>, %arg5: memref<1x8x128xf32, #tpu.memory_space<vmem>>, %arg6: memref<2x8x128xf32, #tpu.memory_space<vmem>>, %arg7: memref<2x8x!tpu.dma_semaphore, #tpu.memory_space<semaphore_mem>>) attributes {dimension_semantics = [#tpu.dimension_semantics<parallel>, #tpu.dimension_semantics<arbitrary>], iteration_bounds = array<i64: 2, 1>, scalar_prefetch = 1 : i64, scratch_operands = 2 : i64, tpu.core_type = #tpu.core_type<tc>, window_params = [{transform_indices = @transform_0, window_bounds = array<i64: 1, 8, 128>}, {}, {transform_indices = @transform_2, window_bounds = array<i64: 1, 8, 128>}]} {
    %c0_i32 = arith.constant 0 : i32
    %0 = arith.cmpi eq, %arg1, %c0_i32 : i32
    %1 = arith.extui %0 : i1 to i32
    %c0_i32_0 = arith.constant 0 : i32
    %2 = arith.cmpi ne, %1, %c0_i32_0 : i32
    scf.if %2 {
      %c8_i32 = arith.constant 8 : i32
      %74 = arith.muli %arg0, %c8_i32 : i32
      %c0_i32_50 = arith.constant 0 : i32
      %75 = arith.addi %74, %c0_i32_50 : i32
      %c0_i32_51 = arith.constant 0 : i32
      %76 = arith.addi %75, %c0_i32_51 : i32
      %77 = arith.index_cast %76 : i32 to index
      %78 = memref.load %arg2[%77] : memref<16xi32, #tpu.memory_space<smem>>
      %c0_i32_52 = arith.constant 0 : i32
      %c0_i32_53 = arith.constant 0 : i32
      %c0_i32_54 = arith.constant 0 : i32
      %c0_i32_55 = arith.constant 0 : i32
      %c0_i32_56 = arith.constant 0 : i32
      %79 = tpu.memref_slice %arg4[%78, %c0_i32_56] : memref<1024x128xf32, #tpu.memory_space<any>> -> memref<1x128xf32, #tpu.memory_space<any>>
      %80 = tpu.memref_squeeze %79 : memref<1x128xf32, #tpu.memory_space<any>> -> memref<128xf32, #tpu.memory_space<any>>
      %c0_i32_57 = arith.constant 0 : i32
      %81 = tpu.memref_slice %arg6[%c0_i32_52, %c0_i32_53, %c0_i32_57] : memref<2x8x128xf32, #tpu.memory_space<vmem>> -> memref<1x1x128xf32, #tpu.memory_space<vmem>>
      %82 = tpu.memref_squeeze %81 : memref<1x1x128xf32, #tpu.memory_space<vmem>> -> memref<128xf32, #tpu.memory_space<vmem>>
      %83 = tpu.memref_slice %arg7[%c0_i32_54, %c0_i32_55] : memref<2x8x!tpu.dma_semaphore, #tpu.memory_space<semaphore_mem>> -> memref<1x1x!tpu.dma_semaphore, #tpu.memory_space<semaphore_mem>>
      %84 = tpu.memref_squeeze %83 : memref<1x1x!tpu.dma_semaphore, #tpu.memory_space<semaphore_mem>> -> memref<!tpu.dma_semaphore, #tpu.memory_space<semaphore_mem>>
      tpu.enqueue_dma source(%80 : memref<128xf32, #tpu.memory_space<any>>) target(%82 : memref<128xf32, #tpu.memory_space<vmem>>) target_semaphore(%84 : memref<!tpu.dma_semaphore, #tpu.memory_space<semaphore_mem>>)
      %c1_i32_58 = arith.constant 1 : i32
      %85 = arith.addi %75, %c1_i32_58 : i32
      %86 = arith.index_cast %85 : i32 to index
      %87 = memref.load %arg2[%86] : memref<16xi32, #tpu.memory_space<smem>>
      %c0_i32_59 = arith.constant 0 : i32
      %c1_i32_60 = arith.constant 1 : i32
      %c0_i32_61 = arith.constant 0 : i32
      %c1_i32_62 = arith.constant 1 : i32
      %c0_i32_63 = arith.constant 0 : i32
      %88 = tpu.memref_slice %arg4[%87, %c0_i32_63] : memref<1024x128xf32, #tpu.memory_space<any>> -> memref<1x128xf32, #tpu.memory_space<any>>
      %89 = tpu.memref_squeeze %88 : memref<1x128xf32, #tpu.memory_space<any>> -> memref<128xf32, #tpu.memory_space<any>>
      %c0_i32_64 = arith.constant 0 : i32
      %90 = tpu.memref_slice %arg6[%c0_i32_59, %c1_i32_60, %c0_i32_64] : memref<2x8x128xf32, #tpu.memory_space<vmem>> -> memref<1x1x128xf32, #tpu.memory_space<vmem>>
      %91 = tpu.memref_squeeze %90 : memref<1x1x128xf32, #tpu.memory_space<vmem>> -> memref<128xf32, #tpu.memory_space<vmem>>
      %92 = tpu.memref_slice %arg7[%c0_i32_61, %c1_i32_62] : memref<2x8x!tpu.dma_semaphore, #tpu.memory_space<semaphore_mem>> -> memref<1x1x!tpu.dma_semaphore, #tpu.memory_space<semaphore_mem>>
      %93 = tpu.memref_squeeze %92 : memref<1x1x!tpu.dma_semaphore, #tpu.memory_space<semaphore_mem>> -> memref<!tpu.dma_semaphore, #tpu.memory_space<semaphore_mem>>
      tpu.enqueue_dma source(%89 : memref<128xf32, #tpu.memory_space<any>>) target(%91 : memref<128xf32, #tpu.memory_space<vmem>>) target_semaphore(%93 : memref<!tpu.dma_semaphore, #tpu.memory_space<semaphore_mem>>)
      %c2_i32_65 = arith.constant 2 : i32
      %94 = arith.addi %75, %c2_i32_65 : i32
      %95 = arith.index_cast %94 : i32 to index
      %96 = memref.load %arg2[%95] : memref<16xi32, #tpu.memory_space<smem>>
      %c0_i32_66 = arith.constant 0 : i32
      %c2_i32_67 = arith.constant 2 : i32
      %c0_i32_68 = arith.constant 0 : i32
      %c2_i32_69 = arith.constant 2 : i32
      %c0_i32_70 = arith.constant 0 : i32
      %97 = tpu.memref_slice %arg4[%96, %c0_i32_70] : memref<1024x128xf32, #tpu.memory_space<any>> -> memref<1x128xf32, #tpu.memory_space<any>>
      %98 = tpu.memref_squeeze %97 : memref<1x128xf32, #tpu.memory_space<any>> -> memref<128xf32, #tpu.memory_space<any>>
      %c0_i32_71 = arith.constant 0 : i32
      %99 = tpu.memref_slice %arg6[%c0_i32_66, %c2_i32_67, %c0_i32_71] : memref<2x8x128xf32, #tpu.memory_space<vmem>> -> memref<1x1x128xf32, #tpu.memory_space<vmem>>
      %100 = tpu.memref_squeeze %99 : memref<1x1x128xf32, #tpu.memory_space<vmem>> -> memref<128xf32, #tpu.memory_space<vmem>>
      %101 = tpu.memref_slice %arg7[%c0_i32_68, %c2_i32_69] : memref<2x8x!tpu.dma_semaphore, #tpu.memory_space<semaphore_mem>> -> memref<1x1x!tpu.dma_semaphore, #tpu.memory_space<semaphore_mem>>
      %102 = tpu.memref_squeeze %101 : memref<1x1x!tpu.dma_semaphore, #tpu.memory_space<semaphore_mem>> -> memref<!tpu.dma_semaphore, #tpu.memory_space<semaphore_mem>>
      tpu.enqueue_dma source(%98 : memref<128xf32, #tpu.memory_space<any>>) target(%100 : memref<128xf32, #tpu.memory_space<vmem>>) target_semaphore(%102 : memref<!tpu.dma_semaphore, #tpu.memory_space<semaphore_mem>>)
      %c3_i32_72 = arith.constant 3 : i32
      %103 = arith.addi %75, %c3_i32_72 : i32
      %104 = arith.index_cast %103 : i32 to index
      %105 = memref.load %arg2[%104] : memref<16xi32, #tpu.memory_space<smem>>
      %c0_i32_73 = arith.constant 0 : i32
      %c3_i32_74 = arith.constant 3 : i32
      %c0_i32_75 = arith.constant 0 : i32
      %c3_i32_76 = arith.constant 3 : i32
      %c0_i32_77 = arith.constant 0 : i32
      %106 = tpu.memref_slice %arg4[%105, %c0_i32_77] : memref<1024x128xf32, #tpu.memory_space<any>> -> memref<1x128xf32, #tpu.memory_space<any>>
      %107 = tpu.memref_squeeze %106 : memref<1x128xf32, #tpu.memory_space<any>> -> memref<128xf32, #tpu.memory_space<any>>
      %c0_i32_78 = arith.constant 0 : i32
      %108 = tpu.memref_slice %arg6[%c0_i32_73, %c3_i32_74, %c0_i32_78] : memref<2x8x128xf32, #tpu.memory_space<vmem>> -> memref<1x1x128xf32, #tpu.memory_space<vmem>>
      %109 = tpu.memref_squeeze %108 : memref<1x1x128xf32, #tpu.memory_space<vmem>> -> memref<128xf32, #tpu.memory_space<vmem>>
      %110 = tpu.memref_slice %arg7[%c0_i32_75, %c3_i32_76] : memref<2x8x!tpu.dma_semaphore, #tpu.memory_space<semaphore_mem>> -> memref<1x1x!tpu.dma_semaphore, #tpu.memory_space<semaphore_mem>>
      %111 = tpu.memref_squeeze %110 : memref<1x1x!tpu.dma_semaphore, #tpu.memory_space<semaphore_mem>> -> memref<!tpu.dma_semaphore, #tpu.memory_space<semaphore_mem>>
      tpu.enqueue_dma source(%107 : memref<128xf32, #tpu.memory_space<any>>) target(%109 : memref<128xf32, #tpu.memory_space<vmem>>) target_semaphore(%111 : memref<!tpu.dma_semaphore, #tpu.memory_space<semaphore_mem>>)
      %c4_i32_79 = arith.constant 4 : i32
      %112 = arith.addi %75, %c4_i32_79 : i32
      %113 = arith.index_cast %112 : i32 to index
      %114 = memref.load %arg2[%113] : memref<16xi32, #tpu.memory_space<smem>>
      %c0_i32_80 = arith.constant 0 : i32
      %c4_i32_81 = arith.constant 4 : i32
      %c0_i32_82 = arith.constant 0 : i32
      %c4_i32_83 = arith.constant 4 : i32
      %c0_i32_84 = arith.constant 0 : i32
      %115 = tpu.memref_slice %arg4[%114, %c0_i32_84] : memref<1024x128xf32, #tpu.memory_space<any>> -> memref<1x128xf32, #tpu.memory_space<any>>
      %116 = tpu.memref_squeeze %115 : memref<1x128xf32, #tpu.memory_space<any>> -> memref<128xf32, #tpu.memory_space<any>>
      %c0_i32_85 = arith.constant 0 : i32
      %117 = tpu.memref_slice %arg6[%c0_i32_80, %c4_i32_81, %c0_i32_85] : memref<2x8x128xf32, #tpu.memory_space<vmem>> -> memref<1x1x128xf32, #tpu.memory_space<vmem>>
      %118 = tpu.memref_squeeze %117 : memref<1x1x128xf32, #tpu.memory_space<vmem>> -> memref<128xf32, #tpu.memory_space<vmem>>
      %119 = tpu.memref_slice %arg7[%c0_i32_82, %c4_i32_83] : memref<2x8x!tpu.dma_semaphore, #tpu.memory_space<semaphore_mem>> -> memref<1x1x!tpu.dma_semaphore, #tpu.memory_space<semaphore_mem>>
      %120 = tpu.memref_squeeze %119 : memref<1x1x!tpu.dma_semaphore, #tpu.memory_space<semaphore_mem>> -> memref<!tpu.dma_semaphore, #tpu.memory_space<semaphore_mem>>
      tpu.enqueue_dma source(%116 : memref<128xf32, #tpu.memory_space<any>>) target(%118 : memref<128xf32, #tpu.memory_space<vmem>>) target_semaphore(%120 : memref<!tpu.dma_semaphore, #tpu.memory_space<semaphore_mem>>)
      %c5_i32_86 = arith.constant 5 : i32
      %121 = arith.addi %75, %c5_i32_86 : i32
      %122 = arith.index_cast %121 : i32 to index
      %123 = memref.load %arg2[%122] : memref<16xi32, #tpu.memory_space<smem>>
      %c0_i32_87 = arith.constant 0 : i32
      %c5_i32_88 = arith.constant 5 : i32
      %c0_i32_89 = arith.constant 0 : i32
      %c5_i32_90 = arith.constant 5 : i32
      %c0_i32_91 = arith.constant 0 : i32
      %124 = tpu.memref_slice %arg4[%123, %c0_i32_91] : memref<1024x128xf32, #tpu.memory_space<any>> -> memref<1x128xf32, #tpu.memory_space<any>>
      %125 = tpu.memref_squeeze %124 : memref<1x128xf32, #tpu.memory_space<any>> -> memref<128xf32, #tpu.memory_space<any>>
      %c0_i32_92 = arith.constant 0 : i32
      %126 = tpu.memref_slice %arg6[%c0_i32_87, %c5_i32_88, %c0_i32_92] : memref<2x8x128xf32, #tpu.memory_space<vmem>> -> memref<1x1x128xf32, #tpu.memory_space<vmem>>
      %127 = tpu.memref_squeeze %126 : memref<1x1x128xf32, #tpu.memory_space<vmem>> -> memref<128xf32, #tpu.memory_space<vmem>>
      %128 = tpu.memref_slice %arg7[%c0_i32_89, %c5_i32_90] : memref<2x8x!tpu.dma_semaphore, #tpu.memory_space<semaphore_mem>> -> memref<1x1x!tpu.dma_semaphore, #tpu.memory_space<semaphore_mem>>
      %129 = tpu.memref_squeeze %128 : memref<1x1x!tpu.dma_semaphore, #tpu.memory_space<semaphore_mem>> -> memref<!tpu.dma_semaphore, #tpu.memory_space<semaphore_mem>>
      tpu.enqueue_dma source(%125 : memref<128xf32, #tpu.memory_space<any>>) target(%127 : memref<128xf32, #tpu.memory_space<vmem>>) target_semaphore(%129 : memref<!tpu.dma_semaphore, #tpu.memory_space<semaphore_mem>>)
      %c6_i32_93 = arith.constant 6 : i32
      %130 = arith.addi %75, %c6_i32_93 : i32
      %131 = arith.index_cast %130 : i32 to index
      %132 = memref.load %arg2[%131] : memref<16xi32, #tpu.memory_space<smem>>
      %c0_i32_94 = arith.constant 0 : i32
      %c6_i32_95 = arith.constant 6 : i32
      %c0_i32_96 = arith.constant 0 : i32
      %c6_i32_97 = arith.constant 6 : i32
      %c0_i32_98 = arith.constant 0 : i32
      %133 = tpu.memref_slice %arg4[%132, %c0_i32_98] : memref<1024x128xf32, #tpu.memory_space<any>> -> memref<1x128xf32, #tpu.memory_space<any>>
      %134 = tpu.memref_squeeze %133 : memref<1x128xf32, #tpu.memory_space<any>> -> memref<128xf32, #tpu.memory_space<any>>
      %c0_i32_99 = arith.constant 0 : i32
      %135 = tpu.memref_slice %arg6[%c0_i32_94, %c6_i32_95, %c0_i32_99] : memref<2x8x128xf32, #tpu.memory_space<vmem>> -> memref<1x1x128xf32, #tpu.memory_space<vmem>>
      %136 = tpu.memref_squeeze %135 : memref<1x1x128xf32, #tpu.memory_space<vmem>> -> memref<128xf32, #tpu.memory_space<vmem>>
      %137 = tpu.memref_slice %arg7[%c0_i32_96, %c6_i32_97] : memref<2x8x!tpu.dma_semaphore, #tpu.memory_space<semaphore_mem>> -> memref<1x1x!tpu.dma_semaphore, #tpu.memory_space<semaphore_mem>>
      %138 = tpu.memref_squeeze %137 : memref<1x1x!tpu.dma_semaphore, #tpu.memory_space<semaphore_mem>> -> memref<!tpu.dma_semaphore, #tpu.memory_space<semaphore_mem>>
      tpu.enqueue_dma source(%134 : memref<128xf32, #tpu.memory_space<any>>) target(%136 : memref<128xf32, #tpu.memory_space<vmem>>) target_semaphore(%138 : memref<!tpu.dma_semaphore, #tpu.memory_space<semaphore_mem>>)
      %c7_i32_100 = arith.constant 7 : i32
      %139 = arith.addi %75, %c7_i32_100 : i32
      %140 = arith.index_cast %139 : i32 to index
      %141 = memref.load %arg2[%140] : memref<16xi32, #tpu.memory_space<smem>>
      %c0_i32_101 = arith.constant 0 : i32
      %c7_i32_102 = arith.constant 7 : i32
      %c0_i32_103 = arith.constant 0 : i32
      %c7_i32_104 = arith.constant 7 : i32
      %c0_i32_105 = arith.constant 0 : i32
      %142 = tpu.memref_slice %arg4[%141, %c0_i32_105] : memref<1024x128xf32, #tpu.memory_space<any>> -> memref<1x128xf32, #tpu.memory_space<any>>
      %143 = tpu.memref_squeeze %142 : memref<1x128xf32, #tpu.memory_space<any>> -> memref<128xf32, #tpu.memory_space<any>>
      %c0_i32_106 = arith.constant 0 : i32
      %144 = tpu.memref_slice %arg6[%c0_i32_101, %c7_i32_102, %c0_i32_106] : memref<2x8x128xf32, #tpu.memory_space<vmem>> -> memref<1x1x128xf32, #tpu.memory_space<vmem>>
      %145 = tpu.memref_squeeze %144 : memref<1x1x128xf32, #tpu.memory_space<vmem>> -> memref<128xf32, #tpu.memory_space<vmem>>
      %146 = tpu.memref_slice %arg7[%c0_i32_103, %c7_i32_104] : memref<2x8x!tpu.dma_semaphore, #tpu.memory_space<semaphore_mem>> -> memref<1x1x!tpu.dma_semaphore, #tpu.memory_space<semaphore_mem>>
      %147 = tpu.memref_squeeze %146 : memref<1x1x!tpu.dma_semaphore, #tpu.memory_space<semaphore_mem>> -> memref<!tpu.dma_semaphore, #tpu.memory_space<semaphore_mem>>
      tpu.enqueue_dma source(%143 : memref<128xf32, #tpu.memory_space<any>>) target(%145 : memref<128xf32, #tpu.memory_space<vmem>>) target_semaphore(%147 : memref<!tpu.dma_semaphore, #tpu.memory_space<semaphore_mem>>)
    } else {
    }
    %c1_i32 = arith.constant 1 : i32
    %3 = arith.addi %arg1, %c1_i32 : i32
    %c1_i32_1 = arith.constant 1 : i32
    %4 = arith.cmpi slt, %3, %c1_i32_1 : i32
    %5 = arith.extui %4 : i1 to i32
    %c0_i32_2 = arith.constant 0 : i32
    %6 = arith.cmpi ne, %5, %c0_i32_2 : i32
    scf.if %6 {
      %c1_i32_50 = arith.constant 1 : i32
      %74 = arith.addi %arg1, %c1_i32_50 : i32
      %c1_i32_51 = arith.constant 1 : i32
      %75 = arith.addi %arg1, %c1_i32_51 : i32
      %c2_i32_52 = arith.constant 2 : i32
      %c0_i32_53 = arith.constant 0 : i32
      %76 = arith.cmpi eq, %c2_i32_52, %c0_i32_53 : i32
      %c1_i32_54 = arith.constant 1 : i32
      %77 = arith.select %76, %c1_i32_54, %c2_i32_52 : i32
      %78 = arith.remsi %75, %77 : i32
      %c0_i32_55 = arith.constant 0 : i32
      %79 = arith.cmpi ne, %78, %c0_i32_55 : i32
      %c0_i32_56 = arith.constant 0 : i32
      %80 = arith.cmpi slt, %78, %c0_i32_56 : i32
      %c0_i32_57 = arith.constant 0 : i32
      %81 = arith.cmpi slt, %77, %c0_i32_57 : i32
      %82 = arith.xori %80, %81 : i1
      %83 = arith.andi %82, %79 : i1
      %84 = arith.addi %78, %77 : i32
      %85 = arith.select %83, %84, %78 : i32
      %c8_i32 = arith.constant 8 : i32
      %86 = arith.muli %arg0, %c8_i32 : i32
      %c8_i32_58 = arith.constant 8 : i32
      %87 = arith.muli %74, %c8_i32_58 : i32
      %88 = arith.addi %86, %87 : i32
      %c0_i32_59 = arith.constant 0 : i32
      %89 = arith.addi %88, %c0_i32_59 : i32
      %90 = arith.index_cast %89 : i32 to index
      %91 = memref.load %arg2[%90] : memref<16xi32, #tpu.memory_space<smem>>
      %c0_i32_60 = arith.constant 0 : i32
      %c0_i32_61 = arith.constant 0 : i32
      %c0_i32_62 = arith.constant 0 : i32
      %92 = tpu.memref_slice %arg4[%91, %c0_i32_62] : memref<1024x128xf32, #tpu.memory_space<any>> -> memref<1x128xf32, #tpu.memory_space<any>>
      %93 = tpu.memref_squeeze %92 : memref<1x128xf32, #tpu.memory_space<any>> -> memref<128xf32, #tpu.memory_space<any>>
      %c0_i32_63 = arith.constant 0 : i32
      %94 = tpu.memref_slice %arg6[%85, %c0_i32_60, %c0_i32_63] : memref<2x8x128xf32, #tpu.memory_space<vmem>> -> memref<1x1x128xf32, #tpu.memory_space<vmem>>
      %95 = tpu.memref_squeeze %94 : memref<1x1x128xf32, #tpu.memory_space<vmem>> -> memref<128xf32, #tpu.memory_space<vmem>>
      %96 = tpu.memref_slice %arg7[%85, %c0_i32_61] : memref<2x8x!tpu.dma_semaphore, #tpu.memory_space<semaphore_mem>> -> memref<1x1x!tpu.dma_semaphore, #tpu.memory_space<semaphore_mem>>
      %97 = tpu.memref_squeeze %96 : memref<1x1x!tpu.dma_semaphore, #tpu.memory_space<semaphore_mem>> -> memref<!tpu.dma_semaphore, #tpu.memory_space<semaphore_mem>>
      tpu.enqueue_dma source(%93 : memref<128xf32, #tpu.memory_space<any>>) target(%95 : memref<128xf32, #tpu.memory_space<vmem>>) target_semaphore(%97 : memref<!tpu.dma_semaphore, #tpu.memory_space<semaphore_mem>>)
      %c1_i32_64 = arith.constant 1 : i32
      %98 = arith.addi %88, %c1_i32_64 : i32
      %99 = arith.index_cast %98 : i32 to index
      %100 = memref.load %arg2[%99] : memref<16xi32, #tpu.memory_space<smem>>
      %c1_i32_65 = arith.constant 1 : i32
      %c1_i32_66 = arith.constant 1 : i32
      %c0_i32_67 = arith.constant 0 : i32
      %101 = tpu.memref_slice %arg4[%100, %c0_i32_67] : memref<1024x128xf32, #tpu.memory_space<any>> -> memref<1x128xf32, #tpu.memory_space<any>>
      %102 = tpu.memref_squeeze %101 : memref<1x128xf32, #tpu.memory_space<any>> -> memref<128xf32, #tpu.memory_space<any>>
      %c0_i32_68 = arith.constant 0 : i32
      %103 = tpu.memref_slice %arg6[%85, %c1_i32_65, %c0_i32_68] : memref<2x8x128xf32, #tpu.memory_space<vmem>> -> memref<1x1x128xf32, #tpu.memory_space<vmem>>
      %104 = tpu.memref_squeeze %103 : memref<1x1x128xf32, #tpu.memory_space<vmem>> -> memref<128xf32, #tpu.memory_space<vmem>>
      %105 = tpu.memref_slice %arg7[%85, %c1_i32_66] : memref<2x8x!tpu.dma_semaphore, #tpu.memory_space<semaphore_mem>> -> memref<1x1x!tpu.dma_semaphore, #tpu.memory_space<semaphore_mem>>
      %106 = tpu.memref_squeeze %105 : memref<1x1x!tpu.dma_semaphore, #tpu.memory_space<semaphore_mem>> -> memref<!tpu.dma_semaphore, #tpu.memory_space<semaphore_mem>>
      tpu.enqueue_dma source(%102 : memref<128xf32, #tpu.memory_space<any>>) target(%104 : memref<128xf32, #tpu.memory_space<vmem>>) target_semaphore(%106 : memref<!tpu.dma_semaphore, #tpu.memory_space<semaphore_mem>>)
      %c2_i32_69 = arith.constant 2 : i32
      %107 = arith.addi %88, %c2_i32_69 : i32
      %108 = arith.index_cast %107 : i32 to index
      %109 = memref.load %arg2[%108] : memref<16xi32, #tpu.memory_space<smem>>
      %c2_i32_70 = arith.constant 2 : i32
      %c2_i32_71 = arith.constant 2 : i32
      %c0_i32_72 = arith.constant 0 : i32
      %110 = tpu.memref_slice %arg4[%109, %c0_i32_72] : memref<1024x128xf32, #tpu.memory_space<any>> -> memref<1x128xf32, #tpu.memory_space<any>>
      %111 = tpu.memref_squeeze %110 : memref<1x128xf32, #tpu.memory_space<any>> -> memref<128xf32, #tpu.memory_space<any>>
      %c0_i32_73 = arith.constant 0 : i32
      %112 = tpu.memref_slice %arg6[%85, %c2_i32_70, %c0_i32_73] : memref<2x8x128xf32, #tpu.memory_space<vmem>> -> memref<1x1x128xf32, #tpu.memory_space<vmem>>
      %113 = tpu.memref_squeeze %112 : memref<1x1x128xf32, #tpu.memory_space<vmem>> -> memref<128xf32, #tpu.memory_space<vmem>>
      %114 = tpu.memref_slice %arg7[%85, %c2_i32_71] : memref<2x8x!tpu.dma_semaphore, #tpu.memory_space<semaphore_mem>> -> memref<1x1x!tpu.dma_semaphore, #tpu.memory_space<semaphore_mem>>
      %115 = tpu.memref_squeeze %114 : memref<1x1x!tpu.dma_semaphore, #tpu.memory_space<semaphore_mem>> -> memref<!tpu.dma_semaphore, #tpu.memory_space<semaphore_mem>>
      tpu.enqueue_dma source(%111 : memref<128xf32, #tpu.memory_space<any>>) target(%113 : memref<128xf32, #tpu.memory_space<vmem>>) target_semaphore(%115 : memref<!tpu.dma_semaphore, #tpu.memory_space<semaphore_mem>>)
      %c3_i32_74 = arith.constant 3 : i32
      %116 = arith.addi %88, %c3_i32_74 : i32
      %117 = arith.index_cast %116 : i32 to index
      %118 = memref.load %arg2[%117] : memref<16xi32, #tpu.memory_space<smem>>
      %c3_i32_75 = arith.constant 3 : i32
      %c3_i32_76 = arith.constant 3 : i32
      %c0_i32_77 = arith.constant 0 : i32
      %119 = tpu.memref_slice %arg4[%118, %c0_i32_77] : memref<1024x128xf32, #tpu.memory_space<any>> -> memref<1x128xf32, #tpu.memory_space<any>>
      %120 = tpu.memref_squeeze %119 : memref<1x128xf32, #tpu.memory_space<any>> -> memref<128xf32, #tpu.memory_space<any>>
      %c0_i32_78 = arith.constant 0 : i32
      %121 = tpu.memref_slice %arg6[%85, %c3_i32_75, %c0_i32_78] : memref<2x8x128xf32, #tpu.memory_space<vmem>> -> memref<1x1x128xf32, #tpu.memory_space<vmem>>
      %122 = tpu.memref_squeeze %121 : memref<1x1x128xf32, #tpu.memory_space<vmem>> -> memref<128xf32, #tpu.memory_space<vmem>>
      %123 = tpu.memref_slice %arg7[%85, %c3_i32_76] : memref<2x8x!tpu.dma_semaphore, #tpu.memory_space<semaphore_mem>> -> memref<1x1x!tpu.dma_semaphore, #tpu.memory_space<semaphore_mem>>
      %124 = tpu.memref_squeeze %123 : memref<1x1x!tpu.dma_semaphore, #tpu.memory_space<semaphore_mem>> -> memref<!tpu.dma_semaphore, #tpu.memory_space<semaphore_mem>>
      tpu.enqueue_dma source(%120 : memref<128xf32, #tpu.memory_space<any>>) target(%122 : memref<128xf32, #tpu.memory_space<vmem>>) target_semaphore(%124 : memref<!tpu.dma_semaphore, #tpu.memory_space<semaphore_mem>>)
      %c4_i32_79 = arith.constant 4 : i32
      %125 = arith.addi %88, %c4_i32_79 : i32
      %126 = arith.index_cast %125 : i32 to index
      %127 = memref.load %arg2[%126] : memref<16xi32, #tpu.memory_space<smem>>
      %c4_i32_80 = arith.constant 4 : i32
      %c4_i32_81 = arith.constant 4 : i32
      %c0_i32_82 = arith.constant 0 : i32
      %128 = tpu.memref_slice %arg4[%127, %c0_i32_82] : memref<1024x128xf32, #tpu.memory_space<any>> -> memref<1x128xf32, #tpu.memory_space<any>>
      %129 = tpu.memref_squeeze %128 : memref<1x128xf32, #tpu.memory_space<any>> -> memref<128xf32, #tpu.memory_space<any>>
      %c0_i32_83 = arith.constant 0 : i32
      %130 = tpu.memref_slice %arg6[%85, %c4_i32_80, %c0_i32_83] : memref<2x8x128xf32, #tpu.memory_space<vmem>> -> memref<1x1x128xf32, #tpu.memory_space<vmem>>
      %131 = tpu.memref_squeeze %130 : memref<1x1x128xf32, #tpu.memory_space<vmem>> -> memref<128xf32, #tpu.memory_space<vmem>>
      %132 = tpu.memref_slice %arg7[%85, %c4_i32_81] : memref<2x8x!tpu.dma_semaphore, #tpu.memory_space<semaphore_mem>> -> memref<1x1x!tpu.dma_semaphore, #tpu.memory_space<semaphore_mem>>
      %133 = tpu.memref_squeeze %132 : memref<1x1x!tpu.dma_semaphore, #tpu.memory_space<semaphore_mem>> -> memref<!tpu.dma_semaphore, #tpu.memory_space<semaphore_mem>>
      tpu.enqueue_dma source(%129 : memref<128xf32, #tpu.memory_space<any>>) target(%131 : memref<128xf32, #tpu.memory_space<vmem>>) target_semaphore(%133 : memref<!tpu.dma_semaphore, #tpu.memory_space<semaphore_mem>>)
      %c5_i32_84 = arith.constant 5 : i32
      %134 = arith.addi %88, %c5_i32_84 : i32
      %135 = arith.index_cast %134 : i32 to index
      %136 = memref.load %arg2[%135] : memref<16xi32, #tpu.memory_space<smem>>
      %c5_i32_85 = arith.constant 5 : i32
      %c5_i32_86 = arith.constant 5 : i32
      %c0_i32_87 = arith.constant 0 : i32
      %137 = tpu.memref_slice %arg4[%136, %c0_i32_87] : memref<1024x128xf32, #tpu.memory_space<any>> -> memref<1x128xf32, #tpu.memory_space<any>>
      %138 = tpu.memref_squeeze %137 : memref<1x128xf32, #tpu.memory_space<any>> -> memref<128xf32, #tpu.memory_space<any>>
      %c0_i32_88 = arith.constant 0 : i32
      %139 = tpu.memref_slice %arg6[%85, %c5_i32_85, %c0_i32_88] : memref<2x8x128xf32, #tpu.memory_space<vmem>> -> memref<1x1x128xf32, #tpu.memory_space<vmem>>
      %140 = tpu.memref_squeeze %139 : memref<1x1x128xf32, #tpu.memory_space<vmem>> -> memref<128xf32, #tpu.memory_space<vmem>>
      %141 = tpu.memref_slice %arg7[%85, %c5_i32_86] : memref<2x8x!tpu.dma_semaphore, #tpu.memory_space<semaphore_mem>> -> memref<1x1x!tpu.dma_semaphore, #tpu.memory_space<semaphore_mem>>
      %142 = tpu.memref_squeeze %141 : memref<1x1x!tpu.dma_semaphore, #tpu.memory_space<semaphore_mem>> -> memref<!tpu.dma_semaphore, #tpu.memory_space<semaphore_mem>>
      tpu.enqueue_dma source(%138 : memref<128xf32, #tpu.memory_space<any>>) target(%140 : memref<128xf32, #tpu.memory_space<vmem>>) target_semaphore(%142 : memref<!tpu.dma_semaphore, #tpu.memory_space<semaphore_mem>>)
      %c6_i32_89 = arith.constant 6 : i32
      %143 = arith.addi %88, %c6_i32_89 : i32
      %144 = arith.index_cast %143 : i32 to index
      %145 = memref.load %arg2[%144] : memref<16xi32, #tpu.memory_space<smem>>
      %c6_i32_90 = arith.constant 6 : i32
      %c6_i32_91 = arith.constant 6 : i32
      %c0_i32_92 = arith.constant 0 : i32
      %146 = tpu.memref_slice %arg4[%145, %c0_i32_92] : memref<1024x128xf32, #tpu.memory_space<any>> -> memref<1x128xf32, #tpu.memory_space<any>>
      %147 = tpu.memref_squeeze %146 : memref<1x128xf32, #tpu.memory_space<any>> -> memref<128xf32, #tpu.memory_space<any>>
      %c0_i32_93 = arith.constant 0 : i32
      %148 = tpu.memref_slice %arg6[%85, %c6_i32_90, %c0_i32_93] : memref<2x8x128xf32, #tpu.memory_space<vmem>> -> memref<1x1x128xf32, #tpu.memory_space<vmem>>
      %149 = tpu.memref_squeeze %148 : memref<1x1x128xf32, #tpu.memory_space<vmem>> -> memref<128xf32, #tpu.memory_space<vmem>>
      %150 = tpu.memref_slice %arg7[%85, %c6_i32_91] : memref<2x8x!tpu.dma_semaphore, #tpu.memory_space<semaphore_mem>> -> memref<1x1x!tpu.dma_semaphore, #tpu.memory_space<semaphore_mem>>
      %151 = tpu.memref_squeeze %150 : memref<1x1x!tpu.dma_semaphore, #tpu.memory_space<semaphore_mem>> -> memref<!tpu.dma_semaphore, #tpu.memory_space<semaphore_mem>>
      tpu.enqueue_dma source(%147 : memref<128xf32, #tpu.memory_space<any>>) target(%149 : memref<128xf32, #tpu.memory_space<vmem>>) target_semaphore(%151 : memref<!tpu.dma_semaphore, #tpu.memory_space<semaphore_mem>>)
      %c7_i32_94 = arith.constant 7 : i32
      %152 = arith.addi %88, %c7_i32_94 : i32
      %153 = arith.index_cast %152 : i32 to index
      %154 = memref.load %arg2[%153] : memref<16xi32, #tpu.memory_space<smem>>
      %c7_i32_95 = arith.constant 7 : i32
      %c7_i32_96 = arith.constant 7 : i32
      %c0_i32_97 = arith.constant 0 : i32
      %155 = tpu.memref_slice %arg4[%154, %c0_i32_97] : memref<1024x128xf32, #tpu.memory_space<any>> -> memref<1x128xf32, #tpu.memory_space<any>>
      %156 = tpu.memref_squeeze %155 : memref<1x128xf32, #tpu.memory_space<any>> -> memref<128xf32, #tpu.memory_space<any>>
      %c0_i32_98 = arith.constant 0 : i32
      %157 = tpu.memref_slice %arg6[%85, %c7_i32_95, %c0_i32_98] : memref<2x8x128xf32, #tpu.memory_space<vmem>> -> memref<1x1x128xf32, #tpu.memory_space<vmem>>
      %158 = tpu.memref_squeeze %157 : memref<1x1x128xf32, #tpu.memory_space<vmem>> -> memref<128xf32, #tpu.memory_space<vmem>>
      %159 = tpu.memref_slice %arg7[%85, %c7_i32_96] : memref<2x8x!tpu.dma_semaphore, #tpu.memory_space<semaphore_mem>> -> memref<1x1x!tpu.dma_semaphore, #tpu.memory_space<semaphore_mem>>
      %160 = tpu.memref_squeeze %159 : memref<1x1x!tpu.dma_semaphore, #tpu.memory_space<semaphore_mem>> -> memref<!tpu.dma_semaphore, #tpu.memory_space<semaphore_mem>>
      tpu.enqueue_dma source(%156 : memref<128xf32, #tpu.memory_space<any>>) target(%158 : memref<128xf32, #tpu.memory_space<vmem>>) target_semaphore(%160 : memref<!tpu.dma_semaphore, #tpu.memory_space<semaphore_mem>>)
    } else {
    }
    %c2_i32 = arith.constant 2 : i32
    %c0_i32_3 = arith.constant 0 : i32
    %7 = arith.cmpi eq, %c2_i32, %c0_i32_3 : i32
    %c1_i32_4 = arith.constant 1 : i32
    %8 = arith.select %7, %c1_i32_4, %c2_i32 : i32
    %9 = arith.remsi %arg1, %8 : i32
    %c0_i32_5 = arith.constant 0 : i32
    %10 = arith.cmpi ne, %9, %c0_i32_5 : i32
    %c0_i32_6 = arith.constant 0 : i32
    %11 = arith.cmpi slt, %9, %c0_i32_6 : i32
    %c0_i32_7 = arith.constant 0 : i32
    %12 = arith.cmpi slt, %8, %c0_i32_7 : i32
    %13 = arith.xori %11, %12 : i1
    %14 = arith.andi %13, %10 : i1
    %15 = arith.addi %9, %8 : i32
    %16 = arith.select %14, %15, %9 : i32
    %c0_i32_8 = arith.constant 0 : i32
    %c0_i32_9 = arith.constant 0 : i32
    %c0_i32_10 = arith.constant 0 : i32
    %c0_i32_11 = arith.constant 0 : i32
    %17 = tpu.memref_slice %arg4[%c0_i32_8, %c0_i32_11] : memref<1024x128xf32, #tpu.memory_space<any>> -> memref<1x128xf32, #tpu.memory_space<any>>
    %18 = tpu.memref_squeeze %17 : memref<1x128xf32, #tpu.memory_space<any>> -> memref<128xf32, #tpu.memory_space<any>>
    %c0_i32_12 = arith.constant 0 : i32
    %19 = tpu.memref_slice %arg6[%16, %c0_i32_9, %c0_i32_12] : memref<2x8x128xf32, #tpu.memory_space<vmem>> -> memref<1x1x128xf32, #tpu.memory_space<vmem>>
    %20 = tpu.memref_squeeze %19 : memref<1x1x128xf32, #tpu.memory_space<vmem>> -> memref<128xf32, #tpu.memory_space<vmem>>
    %21 = tpu.memref_slice %arg7[%16, %c0_i32_10] : memref<2x8x!tpu.dma_semaphore, #tpu.memory_space<semaphore_mem>> -> memref<1x1x!tpu.dma_semaphore, #tpu.memory_space<semaphore_mem>>
    %22 = tpu.memref_squeeze %21 : memref<1x1x!tpu.dma_semaphore, #tpu.memory_space<semaphore_mem>> -> memref<!tpu.dma_semaphore, #tpu.memory_space<semaphore_mem>>
    tpu.wait_dma2 semaphore(%22 : memref<!tpu.dma_semaphore, #tpu.memory_space<semaphore_mem>>) src(%18 : memref<128xf32, #tpu.memory_space<any>>) dst(%20 : memref<128xf32, #tpu.memory_space<vmem>>)
    %c0_i32_13 = arith.constant 0 : i32
    %c1_i32_14 = arith.constant 1 : i32
    %c1_i32_15 = arith.constant 1 : i32
    %c0_i32_16 = arith.constant 0 : i32
    %23 = tpu.memref_slice %arg4[%c0_i32_13, %c0_i32_16] : memref<1024x128xf32, #tpu.memory_space<any>> -> memref<1x128xf32, #tpu.memory_space<any>>
    %24 = tpu.memref_squeeze %23 : memref<1x128xf32, #tpu.memory_space<any>> -> memref<128xf32, #tpu.memory_space<any>>
    %c0_i32_17 = arith.constant 0 : i32
    %25 = tpu.memref_slice %arg6[%16, %c1_i32_14, %c0_i32_17] : memref<2x8x128xf32, #tpu.memory_space<vmem>> -> memref<1x1x128xf32, #tpu.memory_space<vmem>>
    %26 = tpu.memref_squeeze %25 : memref<1x1x128xf32, #tpu.memory_space<vmem>> -> memref<128xf32, #tpu.memory_space<vmem>>
    %27 = tpu.memref_slice %arg7[%16, %c1_i32_15] : memref<2x8x!tpu.dma_semaphore, #tpu.memory_space<semaphore_mem>> -> memref<1x1x!tpu.dma_semaphore, #tpu.memory_space<semaphore_mem>>
    %28 = tpu.memref_squeeze %27 : memref<1x1x!tpu.dma_semaphore, #tpu.memory_space<semaphore_mem>> -> memref<!tpu.dma_semaphore, #tpu.memory_space<semaphore_mem>>
    tpu.wait_dma2 semaphore(%28 : memref<!tpu.dma_semaphore, #tpu.memory_space<semaphore_mem>>) src(%24 : memref<128xf32, #tpu.memory_space<any>>) dst(%26 : memref<128xf32, #tpu.memory_space<vmem>>)
    %c0_i32_18 = arith.constant 0 : i32
    %c2_i32_19 = arith.constant 2 : i32
    %c2_i32_20 = arith.constant 2 : i32
    %c0_i32_21 = arith.constant 0 : i32
    %29 = tpu.memref_slice %arg4[%c0_i32_18, %c0_i32_21] : memref<1024x128xf32, #tpu.memory_space<any>> -> memref<1x128xf32, #tpu.memory_space<any>>
    %30 = tpu.memref_squeeze %29 : memref<1x128xf32, #tpu.memory_space<any>> -> memref<128xf32, #tpu.memory_space<any>>
    %c0_i32_22 = arith.constant 0 : i32
    %31 = tpu.memref_slice %arg6[%16, %c2_i32_19, %c0_i32_22] : memref<2x8x128xf32, #tpu.memory_space<vmem>> -> memref<1x1x128xf32, #tpu.memory_space<vmem>>
    %32 = tpu.memref_squeeze %31 : memref<1x1x128xf32, #tpu.memory_space<vmem>> -> memref<128xf32, #tpu.memory_space<vmem>>
    %33 = tpu.memref_slice %arg7[%16, %c2_i32_20] : memref<2x8x!tpu.dma_semaphore, #tpu.memory_space<semaphore_mem>> -> memref<1x1x!tpu.dma_semaphore, #tpu.memory_space<semaphore_mem>>
    %34 = tpu.memref_squeeze %33 : memref<1x1x!tpu.dma_semaphore, #tpu.memory_space<semaphore_mem>> -> memref<!tpu.dma_semaphore, #tpu.memory_space<semaphore_mem>>
    tpu.wait_dma2 semaphore(%34 : memref<!tpu.dma_semaphore, #tpu.memory_space<semaphore_mem>>) src(%30 : memref<128xf32, #tpu.memory_space<any>>) dst(%32 : memref<128xf32, #tpu.memory_space<vmem>>)
    %c0_i32_23 = arith.constant 0 : i32
    %c3_i32 = arith.constant 3 : i32
    %c3_i32_24 = arith.constant 3 : i32
    %c0_i32_25 = arith.constant 0 : i32
    %35 = tpu.memref_slice %arg4[%c0_i32_23, %c0_i32_25] : memref<1024x128xf32, #tpu.memory_space<any>> -> memref<1x128xf32, #tpu.memory_space<any>>
    %36 = tpu.memref_squeeze %35 : memref<1x128xf32, #tpu.memory_space<any>> -> memref<128xf32, #tpu.memory_space<any>>
    %c0_i32_26 = arith.constant 0 : i32
    %37 = tpu.memref_slice %arg6[%16, %c3_i32, %c0_i32_26] : memref<2x8x128xf32, #tpu.memory_space<vmem>> -> memref<1x1x128xf32, #tpu.memory_space<vmem>>
    %38 = tpu.memref_squeeze %37 : memref<1x1x128xf32, #tpu.memory_space<vmem>> -> memref<128xf32, #tpu.memory_space<vmem>>
    %39 = tpu.memref_slice %arg7[%16, %c3_i32_24] : memref<2x8x!tpu.dma_semaphore, #tpu.memory_space<semaphore_mem>> -> memref<1x1x!tpu.dma_semaphore, #tpu.memory_space<semaphore_mem>>
    %40 = tpu.memref_squeeze %39 : memref<1x1x!tpu.dma_semaphore, #tpu.memory_space<semaphore_mem>> -> memref<!tpu.dma_semaphore, #tpu.memory_space<semaphore_mem>>
    tpu.wait_dma2 semaphore(%40 : memref<!tpu.dma_semaphore, #tpu.memory_space<semaphore_mem>>) src(%36 : memref<128xf32, #tpu.memory_space<any>>) dst(%38 : memref<128xf32, #tpu.memory_space<vmem>>)
    %c0_i32_27 = arith.constant 0 : i32
    %c4_i32 = arith.constant 4 : i32
    %c4_i32_28 = arith.constant 4 : i32
    %c0_i32_29 = arith.constant 0 : i32
    %41 = tpu.memref_slice %arg4[%c0_i32_27, %c0_i32_29] : memref<1024x128xf32, #tpu.memory_space<any>> -> memref<1x128xf32, #tpu.memory_space<any>>
    %42 = tpu.memref_squeeze %41 : memref<1x128xf32, #tpu.memory_space<any>> -> memref<128xf32, #tpu.memory_space<any>>
    %c0_i32_30 = arith.constant 0 : i32
    %43 = tpu.memref_slice %arg6[%16, %c4_i32, %c0_i32_30] : memref<2x8x128xf32, #tpu.memory_space<vmem>> -> memref<1x1x128xf32, #tpu.memory_space<vmem>>
    %44 = tpu.memref_squeeze %43 : memref<1x1x128xf32, #tpu.memory_space<vmem>> -> memref<128xf32, #tpu.memory_space<vmem>>
    %45 = tpu.memref_slice %arg7[%16, %c4_i32_28] : memref<2x8x!tpu.dma_semaphore, #tpu.memory_space<semaphore_mem>> -> memref<1x1x!tpu.dma_semaphore, #tpu.memory_space<semaphore_mem>>
    %46 = tpu.memref_squeeze %45 : memref<1x1x!tpu.dma_semaphore, #tpu.memory_space<semaphore_mem>> -> memref<!tpu.dma_semaphore, #tpu.memory_space<semaphore_mem>>
    tpu.wait_dma2 semaphore(%46 : memref<!tpu.dma_semaphore, #tpu.memory_space<semaphore_mem>>) src(%42 : memref<128xf32, #tpu.memory_space<any>>) dst(%44 : memref<128xf32, #tpu.memory_space<vmem>>)
    %c0_i32_31 = arith.constant 0 : i32
    %c5_i32 = arith.constant 5 : i32
    %c5_i32_32 = arith.constant 5 : i32
    %c0_i32_33 = arith.constant 0 : i32
    %47 = tpu.memref_slice %arg4[%c0_i32_31, %c0_i32_33] : memref<1024x128xf32, #tpu.memory_space<any>> -> memref<1x128xf32, #tpu.memory_space<any>>
    %48 = tpu.memref_squeeze %47 : memref<1x128xf32, #tpu.memory_space<any>> -> memref<128xf32, #tpu.memory_space<any>>
    %c0_i32_34 = arith.constant 0 : i32
    %49 = tpu.memref_slice %arg6[%16, %c5_i32, %c0_i32_34] : memref<2x8x128xf32, #tpu.memory_space<vmem>> -> memref<1x1x128xf32, #tpu.memory_space<vmem>>
    %50 = tpu.memref_squeeze %49 : memref<1x1x128xf32, #tpu.memory_space<vmem>> -> memref<128xf32, #tpu.memory_space<vmem>>
    %51 = tpu.memref_slice %arg7[%16, %c5_i32_32] : memref<2x8x!tpu.dma_semaphore, #tpu.memory_space<semaphore_mem>> -> memref<1x1x!tpu.dma_semaphore, #tpu.memory_space<semaphore_mem>>
    %52 = tpu.memref_squeeze %51 : memref<1x1x!tpu.dma_semaphore, #tpu.memory_space<semaphore_mem>> -> memref<!tpu.dma_semaphore, #tpu.memory_space<semaphore_mem>>
    tpu.wait_dma2 semaphore(%52 : memref<!tpu.dma_semaphore, #tpu.memory_space<semaphore_mem>>) src(%48 : memref<128xf32, #tpu.memory_space<any>>) dst(%50 : memref<128xf32, #tpu.memory_space<vmem>>)
    %c0_i32_35 = arith.constant 0 : i32
    %c6_i32 = arith.constant 6 : i32
    %c6_i32_36 = arith.constant 6 : i32
    %c0_i32_37 = arith.constant 0 : i32
    %53 = tpu.memref_slice %arg4[%c0_i32_35, %c0_i32_37] : memref<1024x128xf32, #tpu.memory_space<any>> -> memref<1x128xf32, #tpu.memory_space<any>>
    %54 = tpu.memref_squeeze %53 : memref<1x128xf32, #tpu.memory_space<any>> -> memref<128xf32, #tpu.memory_space<any>>
    %c0_i32_38 = arith.constant 0 : i32
    %55 = tpu.memref_slice %arg6[%16, %c6_i32, %c0_i32_38] : memref<2x8x128xf32, #tpu.memory_space<vmem>> -> memref<1x1x128xf32, #tpu.memory_space<vmem>>
    %56 = tpu.memref_squeeze %55 : memref<1x1x128xf32, #tpu.memory_space<vmem>> -> memref<128xf32, #tpu.memory_space<vmem>>
    %57 = tpu.memref_slice %arg7[%16, %c6_i32_36] : memref<2x8x!tpu.dma_semaphore, #tpu.memory_space<semaphore_mem>> -> memref<1x1x!tpu.dma_semaphore, #tpu.memory_space<semaphore_mem>>
    %58 = tpu.memref_squeeze %57 : memref<1x1x!tpu.dma_semaphore, #tpu.memory_space<semaphore_mem>> -> memref<!tpu.dma_semaphore, #tpu.memory_space<semaphore_mem>>
    tpu.wait_dma2 semaphore(%58 : memref<!tpu.dma_semaphore, #tpu.memory_space<semaphore_mem>>) src(%54 : memref<128xf32, #tpu.memory_space<any>>) dst(%56 : memref<128xf32, #tpu.memory_space<vmem>>)
    %c0_i32_39 = arith.constant 0 : i32
    %c7_i32 = arith.constant 7 : i32
    %c7_i32_40 = arith.constant 7 : i32
    %c0_i32_41 = arith.constant 0 : i32
    %59 = tpu.memref_slice %arg4[%c0_i32_39, %c0_i32_41] : memref<1024x128xf32, #tpu.memory_space<any>> -> memref<1x128xf32, #tpu.memory_space<any>>
    %60 = tpu.memref_squeeze %59 : memref<1x128xf32, #tpu.memory_space<any>> -> memref<128xf32, #tpu.memory_space<any>>
    %c0_i32_42 = arith.constant 0 : i32
    %61 = tpu.memref_slice %arg6[%16, %c7_i32, %c0_i32_42] : memref<2x8x128xf32, #tpu.memory_space<vmem>> -> memref<1x1x128xf32, #tpu.memory_space<vmem>>
    %62 = tpu.memref_squeeze %61 : memref<1x1x128xf32, #tpu.memory_space<vmem>> -> memref<128xf32, #tpu.memory_space<vmem>>
    %63 = tpu.memref_slice %arg7[%16, %c7_i32_40] : memref<2x8x!tpu.dma_semaphore, #tpu.memory_space<semaphore_mem>> -> memref<1x1x!tpu.dma_semaphore, #tpu.memory_space<semaphore_mem>>
    %64 = tpu.memref_squeeze %63 : memref<1x1x!tpu.dma_semaphore, #tpu.memory_space<semaphore_mem>> -> memref<!tpu.dma_semaphore, #tpu.memory_space<semaphore_mem>>
    tpu.wait_dma2 semaphore(%64 : memref<!tpu.dma_semaphore, #tpu.memory_space<semaphore_mem>>) src(%60 : memref<128xf32, #tpu.memory_space<any>>) dst(%62 : memref<128xf32, #tpu.memory_space<vmem>>)
    %65 = arith.index_cast %16 : i32 to index
    %c0 = arith.constant 0 : index
    %c0_43 = arith.constant 0 : index
    %66 = vector.load %arg6[%65, %c0, %c0_43] : memref<2x8x128xf32, #tpu.memory_space<vmem>>, vector<1x8x128xf32>
    %67 = vector.shape_cast %66 : vector<1x8x128xf32> to vector<8x128xf32>
    %c0_44 = arith.constant 0 : index
    %c0_45 = arith.constant 0 : index
    %c0_46 = arith.constant 0 : index
    %68 = vector.load %arg3[%c0_44, %c0_45, %c0_46] : memref<1x8x128xf32, #tpu.memory_space<vmem>>, vector<1x8x128xf32>
    %69 = vector.shape_cast %68 : vector<1x8x128xf32> to vector<8x128xf32>
    %70 = arith.addf %67, %69 : vector<8x128xf32>
    %c0_47 = arith.constant 0 : index
    %c0_48 = arith.constant 0 : index
    %c0_49 = arith.constant 0 : index
    %71 = vector.load %arg5[%c0_47, %c0_48, %c0_49] : memref<1x8x128xf32, #tpu.memory_space<vmem>>, vector<1x8x128xf32>
    %72 = vector.shape_cast %71 : vector<1x8x128xf32> to vector<8x128xf32>
    %73 = vector.shape_cast %70 : vector<8x128xf32> to vector<1x8x128xf32>
    tpu.vector_store %arg5[%c0_47, %c0_48, %c0_49], %73 {strides = array<i32>} : memref<1x8x128xf32, #tpu.memory_space<vmem>>, vector<1x8x128xf32>,
    return
  }
  func.func @transform_0(%arg0: i32, %arg1: i32, %arg2: memref<16xi32, #tpu.memory_space<smem>>) -> (i32, i32, i32) {
    %c0_i32 = arith.constant 0 : i32
    %c0_i32_0 = arith.constant 0 : i32
    %c0_i32_1 = arith.constant 0 : i32
    return %c0_i32, %arg1, %c0_i32_0 : i32, i32, i32
  }
  func.func @transform_2(%arg0: i32, %arg1: i32, %arg2: memref<16xi32, #tpu.memory_space<smem>>) -> (i32, i32, i32) {
    %c0_i32 = arith.constant 0 : i32
    %c0_i32_0 = arith.constant 0 : i32
    return %arg0, %arg1, %c0_i32 : i32, i32, i32
  }
}

</mosaic_0001>

<llo_original>
// kernel: tpu_custom_call.1
$region0: #{tpu_custom_call.1}
  #allocation0 [shape = 'u32[]', space=smem, size = 0x4, offset = 0x4, fixed_abs, tag = 'smem constant byte address 0x4 - core index']
  #allocation1 [shape = 'u32[144,128]{1,0:T(1,128)}', space=vmem, size = 0x12000, scoped, tag = 'internal scratch']
  #allocation2 [shape = 'f32[2,8,128]{2,1,0:T(8,128)}', space=vmem, size = 0x2000, scoped, tag = 'scratch operand']
  #allocation3 [shape = 's32[16]{0}', space=sflag, size = 0x40, scoped, tag = 'scratch operand']
  #allocation4 [shape = 's32[1]{0}', space=sflag, size = 0x4, scoped, tag = 'scoped memory for tpu_custom_call.1']
  #allocation5 [shape = 'u8[512]{0}', space=smem, size = 0x200, scoped, tag = 'prefetched SMEM operand 0']
  #allocation10 [shape = 's32[]', space=sflag, size = 0x4, offset = 0, fixed_abs, tag = 'sflag constant byte address 0x0 - dummy sync flag']
  #allocation11 [shape = 's32[]', space=sflag, size = 0x4, offset = 0, fixed_abs, tag = 'sflag constant byte address 0x0 - dummy sync flag']
  #allocation12 [shape = 'u32[]', space=smem, size = 0x4, offset = 0x44, fixed_abs, tag = 'smem constant byte address 0x44 - assertion arg 0']
  #allocation13 [shape = 'u32[]', space=smem, size = 0x4, offset = 0x48, fixed_abs, tag = 'smem constant byte address 0x48 - assertion arg 1']
  #allocation14 [shape = 's32[]', space=sflag, size = 0x4, offset = 0, fixed_abs, tag = 'sflag constant byte address 0x0 - dummy sync flag']
  #allocation15 [shape = 's32[]', space=sflag, size = 0x4, offset = 0, fixed_abs, tag = 'sflag constant byte address 0x0 - dummy sync flag']
  #allocation16 [shape = 's32[]', space=sflag, size = 0x4, offset = 0, fixed_abs, tag = 'sflag constant byte address 0x0 - dummy sync flag']
  #allocation17 [shape = 's32[]', space=sflag, size = 0x4, offset = 0, fixed_abs, tag = 'sflag constant byte address 0x0 - dummy sync flag']
  #allocation18 [shape = 's32[]', space=sflag, size = 0x4, offset = 0, fixed_abs, tag = 'sflag constant byte address 0x0 - dummy sync flag']
  #allocation19 [shape = 's32[]', space=sflag, size = 0x4, offset = 0, fixed_abs, tag = 'sflag constant byte address 0x0 - dummy sync flag']
  #allocation20 [shape = 's32[]', space=sflag, size = 0x4, offset = 0, fixed_abs, tag = 'sflag constant byte address 0x0 - dummy sync flag']
  #allocation21 [shape = 's32[]', space=sflag, size = 0x4, offset = 0, fixed_abs, tag = 'sflag constant byte address 0x0 - dummy sync flag']
  #allocation22 [shape = 's32[]', space=sflag, size = 0x4, offset = 0, fixed_abs, tag = 'sflag constant byte address 0x0 - dummy sync flag']
  #allocation23 [shape = 's32[]', space=sflag, size = 0x4, offset = 0, fixed_abs, tag = 'sflag constant byte address 0x0 - dummy sync flag']
  #allocation24 [shape = 's32[]', space=sflag, size = 0x4, offset = 0, fixed_abs, tag = 'sflag constant byte address 0x0 - dummy sync flag']
  #allocation25 [shape = 's32[]', space=sflag, size = 0x4, offset = 0, fixed_abs, tag = 'sflag constant byte address 0x0 - dummy sync flag']
  #allocation26 [shape = 's32[]', space=sflag, size = 0x4, offset = 0, fixed_abs, tag = 'sflag constant byte address 0x0 - dummy sync flag']
  #allocation27 [shape = 's32[]', space=sflag, size = 0x4, offset = 0, fixed_abs, tag = 'sflag constant byte address 0x0 - dummy sync flag']
  #allocation28 [shape = 's32[]', space=sflag, size = 0x4, offset = 0, fixed_abs, tag = 'sflag constant byte address 0x0 - dummy sync flag']
  #allocation29 [shape = 's32[]', space=sflag, size = 0x4, offset = 0, fixed_abs, tag = 'sflag constant byte address 0x0 - dummy sync flag']
  #allocation30 [shape = 's32[]', space=sflag, size = 0x4, offset = 0, fixed_abs, tag = 'sflag constant byte address 0x0 - dummy sync flag']
  #allocation31 [shape = 's32[]', space=sflag, size = 0x4, offset = 0, fixed_abs, tag = 'sflag constant byte address 0x0 - dummy sync flag']
  #allocation32 [shape = 's32[]', space=sflag, size = 0x4, offset = 0, fixed_abs, tag = 'sflag constant byte address 0x0 - dummy sync flag']
  #allocation33 [shape = 's32[]', space=sflag, size = 0x4, offset = 0, fixed_abs, tag = 'sflag constant byte address 0x0 - dummy sync flag']
  #allocation34 [shape = 's32[]', space=sflag, size = 0x4, offset = 0, fixed_abs, tag = 'sflag constant byte address 0x0 - dummy sync flag']
  #allocation35 [shape = 's32[]', space=sflag, size = 0x4, offset = 0, fixed_abs, tag = 'sflag constant byte address 0x0 - dummy sync flag']
  #allocation36 [shape = 's32[]', space=sflag, size = 0x4, offset = 0, fixed_abs, tag = 'sflag constant byte address 0x0 - dummy sync flag']
  #allocation37 [shape = 's32[]', space=sflag, size = 0x4, offset = 0, fixed_abs, tag = 'sflag constant byte address 0x0 - dummy sync flag']
  #allocation38 [shape = 's32[]', space=sflag, size = 0x4, offset = 0, fixed_abs, tag = 'sflag constant byte address 0x0 - dummy sync flag']
  #allocation39 [shape = 's32[]', space=sflag, size = 0x4, offset = 0, fixed_abs, tag = 'sflag constant byte address 0x0 - dummy sync flag']
  #allocation40 [shape = 's32[]', space=sflag, size = 0x4, offset = 0, fixed_abs, tag = 'sflag constant byte address 0x0 - dummy sync flag']
  #allocation41 [shape = 's32[]', space=sflag, size = 0x4, offset = 0, fixed_abs, tag = 'sflag constant byte address 0x0 - dummy sync flag']
  #allocation42 [shape = 's32[]', space=sflag, size = 0x4, offset = 0, fixed_abs, tag = 'sflag constant byte address 0x0 - dummy sync flag']
  #allocation43 [shape = 's32[]', space=sflag, size = 0x4, offset = 0, fixed_abs, tag = 'sflag constant byte address 0x0 - dummy sync flag']
  %s0 = inlined_call_operand.hbm [shape: s32[16], index: 0, kind: input, shape index: {}]
  %s1 = inlined_call_operand.hbm [shape: f32[1,8,128], index: 1, kind: input, shape index: {}]
  %s2 = inlined_call_operand.hbm [shape: f32[1024,128], index: 2, kind: input, shape index: {}]
  %s3 = inlined_call_operand.hbm [shape: f32[2,8,128], index: 3, kind: output, shape index: {}]
  %s4 = sld [smem:[#allocation0]]
  $region113: #{tpu_custom_call.1} parent=0
    _
  %s6 = ssub.s32 1, %s4
  %s7 = scalar_select 0, %s6, %s4
  %9 = dma.hbm_to_smem %s0, 16, [#allocation5], [#allocation4]
  %10 = dma.done [#allocation4], 16
  %11 = sfence
  $region1: #{tpu_custom_call.1} parent=0
    #allocation6 [shape = 'u8[4096]{0}', space=vmem, size = 0x1000, scoped, tag = 'input window, operand 1, single buffered']
    #allocation7 [shape = 's32[2]{0}', space=sflag, size = 0x8, scoped, tag = 'scoped memory for tpu_custom_call.1']
    #allocation8 [shape = 's32[2]{0}', space=sflag, size = 0x8, scoped, tag = 'scoped memory for tpu_custom_call.1']
    #allocation9 [shape = 'u8[8192]{0}', space=vmem, size = 0x2000, scoped, tag = 'output window, operand 0']
    %12 = vsyncpa [#allocation7], 0
    %13 = vsyncpa [#allocation8], 0
    %s14 = scalar_lea.sflag [#allocation8], 1
    %15 = vsyncpa %s14, 0
    loop: start=0, step=1, limit=4
    $region2: #{tpu_custom_call.1} parent=1 // loop_pre_header
      _
    $region3: #{tpu_custom_call.1} parent=1 // loop_header
      %s17 = sphi 0, %s21
      %p18 = scmp.ge.s32.totalorder %s17, 4
      %s24 = sphi 0, %s36
      %s25 = sphi 0, %s32
      %s26 = sphi 0, %s24
      %s27 = sphi 0, %s25
      %s28 = sphi 0, %s26
      %s29 = sphi 0, %s27
      %s39 = sphi 0, %s41
      %s42 = sphi 0, %s39
      %s43 = sphi 0, %s42
      %s59 = sphi 0, %s43
      %s67 = sphi 0, %s69
      %s70 = sphi 0, %s67
      %s71 = sphi 0, %s70
      %s87 = sphi 0, %s71
    $region4: #{tpu_custom_call.1} parent=1 // loop_header_branch
      %20 = sbr.rel (%p18) target = $region8
    $region5: #{tpu_custom_call.1} parent=1 // loop_body
      %s22 = ssub.s32 %s17, 1
      %s23 = ssub.s32 %s17, 2
      %s30 = sadd.s32 1, %s25
      %p31 = scmp.ge.s32.totalorder %s30, 1
      %s32 = scalar_select %p31, 0, %s30
      %s33 = sadd.s32 1, %s24
      %s34 = scalar_select %p31, %s33, %s24
      %p35 = scmp.ge.s32.totalorder %s34, 2
      %s36 = scalar_select %p35, 0, %s34
      %s37 = ssub.s32 %s25, %s32
      %p38 = scmp.eq.s32.totalorder %s37, 0
      %s40 = sadd.s32 %s39, 1
      %s41 = scalar_select %p38, %s39, %s40
      %p44 = pneg %p38
      %p45 = scmp.eq.s32.totalorder %s17, 1
      %p46 = por %p44, %p45
      %p47 = scmp.ne.s32.totalorder %s39, %s42
      %p48 = scmp.eq.s32.totalorder %s17, 0
      %p49 = por %p47, %p48
      %p50 = scmp.ne.s32.totalorder %s39, %s42
      %p51 = scmp.eq.s32.totalorder %s22, 1
      %p52 = por %p50, %p51
      %p53 = scmp.ne.s32.totalorder %s42, %s43
      %p54 = scmp.eq.s32.totalorder %s22, 0
      %p55 = por %p53, %p54
      %p56 = scmp.ne.s32.totalorder %s42, %s43
      %p57 = scmp.eq.s32.totalorder %s23, 1
      %p58 = por %p56, %p57
      %p60 = scmp.ne.s32.totalorder %s43, %s59
      %p61 = scmp.eq.s32.totalorder %s23, 0
      %p62 = por %p60, %p61
      %s63 = ssub.s32 %s24, %s36
      %s64 = ssub.s32 %s25, %s32
      %s65 = sor.u32 %s63, %s64
      %p66 = scmp.eq.s32.totalorder %s65, 0
      %s68 = sadd.s32 %s67, 1
      %s69 = scalar_select %p66, %s67, %s68
      %p72 = pneg %p66
      %p73 = scmp.eq.s32.totalorder %s17, 1
      %p74 = por %p72, %p73
      %p75 = scmp.ne.s32.totalorder %s67, %s70
      %p76 = scmp.eq.s32.totalorder %s17, 0
      %p77 = por %p75, %p76
      %p78 = scmp.ne.s32.totalorder %s67, %s70
      %p79 = scmp.eq.s32.totalorder %s22, 1
      %p80 = por %p78, %p79
      %p81 = scmp.ne.s32.totalorder %s70, %s71
      %p82 = scmp.eq.s32.totalorder %s22, 0
      %p83 = por %p81, %p82
      %p84 = scmp.ne.s32.totalorder %s70, %s71
      %p85 = scmp.eq.s32.totalorder %s23, 1
      %p86 = por %p84, %p85
      %p88 = scmp.ne.s32.totalorder %s71, %s87
      %p89 = scmp.eq.s32.totalorder %s23, 0
      %p90 = por %p88, %p89
      %p91 = scmp.le.s32.totalorder 1, %s17
      %p92 = scmp.lt.s32.totalorder %s17, 3
      %p93 = pnand %p91, %p92
      %p94 = pneg %p93
      // Predicated region
      $region9: #{tpu_custom_call.1} parent=5 // pred_check
        _
      $region10: #{tpu_custom_call.1} parent=5 // pred_check_branch
        %96 = sbr.rel (%p93) target = $region12
      $region11: #{tpu_custom_call.1} parent=5 // pred_region
        %s97 = ssub.s32 %s17, 1
        // Predicated region
        $region13: #{tpu_custom_call.1} parent=11 // pred_check
          %p98 = pneg %p55
        $region14: #{tpu_custom_call.1} parent=11 // pred_check_branch
          %100 = sbr.rel (%p98) target = $region16
        $region15: #{tpu_custom_call.1} parent=11 // pred_region
          %s102 = ssub.s32 128, 128
          %103 = vsyncadd [#allocation7], %s102
          %s104 = smul.addr %s27, 128
          %s105 = scalar_lea.hbm %s1, %s104
          %s107 = sshll.u32 [#allocation6], 4
          %s108 = int_to_ptr.vmem [resolvable:$true] %s107
          %110 = dma.hbm_to_vmem [thread:$0]  %s105, 128, %s108, [#allocation7]
        $region16: #{tpu_custom_call.1} parent=11 // pred_fallthru
          _
      $region12: #{tpu_custom_call.1} parent=5 // pred_fallthru
        _
      %p111 = scmp.lt.s32.totalorder %s17, 2
      // Predicated region
      $region17: #{tpu_custom_call.1} parent=5 // pred_check
        %p112 = pneg %p111
      $region18: #{tpu_custom_call.1} parent=5 // pred_check_branch
        %114 = sbr.rel (%p112) target = $region20
      $region19: #{tpu_custom_call.1} parent=5 // pred_region
        _
      $region20: #{tpu_custom_call.1} parent=5 // pred_fallthru
        _
      %p115 = scmp.le.s32.totalorder 1, %s17
      %p116 = scmp.lt.s32.totalorder %s17, 3
      %p117 = pnand %p115, %p116
      %p118 = pneg %p117
      // Predicated region
      $region21: #{tpu_custom_call.1} parent=5 // pred_check
        _
      $region22: #{tpu_custom_call.1} parent=5 // pred_check_branch
        %120 = sbr.rel (%p117) target = $region24
      $region23: #{tpu_custom_call.1} parent=5 // pred_region
        %s121 = ssub.s32 %s17, 1
        // Predicated region
        $region25: #{tpu_custom_call.1} parent=23 // pred_check
          %p122 = pneg %p55
        $region26: #{tpu_custom_call.1} parent=23 // pred_check_branch
          %124 = sbr.rel (%p122) target = $region28
        $region27: #{tpu_custom_call.1} parent=23 // pred_region
          %125 = dma.done [#allocation7], 128
        $region28: #{tpu_custom_call.1} parent=23 // pred_fallthru
          _
        %p126 = pneg %p55
        %p127 = pneg %p52
        %p128 = pneg %p83
        %p129 = pneg %p80
        %s130 = sand.u32 %s70, 1
        %s131 = scalar_lea.sflag [#allocation8], %s130
        %s132 = sand.u32 %s70, 1
        %s133 = smul.addr %s132, 8
        %s134 = scalar_lea.vmem [#allocation9], %s133
        %p135 = scmp.eq.s32.totalorder %s27, 0
        // Predicated region
        $region29: #{tpu_custom_call.1} parent=23 // pred_check
          %p136 = pneg %p135
        $region30: #{tpu_custom_call.1} parent=23 // pred_check_branch
          %138 = sbr.rel (%p136) target = $region32
        $region31: #{tpu_custom_call.1} parent=23 // pred_region
          %s139 = smul.u32 %s26, 8
          %s140 = sld [smem:[#allocation5 + %s139]]
          %s141 = smul.addr %s140, 16
          %s142 = scalar_lea.hbm %s2, %s141
          // Predicated region
          $region33: #{tpu_custom_call.1} parent=31 // pred_check
            _
          $region34: #{tpu_custom_call.1} parent=31 // pred_check_branch
            %144 = sbr.rel target = $region36
          $region35: #{tpu_custom_call.1} parent=31 // pred_region
            %145 = sst [smem:[#allocation12]] [#allocation11]
            %146 = sst [smem:[#allocation13]] [#allocation10]
          $region36: #{tpu_custom_call.1} parent=31 // pred_fallthru
            _
          %148 = shalt.err (0)
          %s150 = sshll.u32 [#allocation2], 4
          %s151 = int_to_ptr.vmem [resolvable:$true] %s150
          %153 = dma.hbm_to_vmem [thread:$0]  %s142, 16, %s151, [#allocation3]
          %s154 = sadd.s32 %s139, 1
          %s155 = sld [smem:[#allocation5 + %s154]]
          %s156 = smul.addr %s155, 16
          %s157 = scalar_lea.hbm %s2, %s156
          %s158 = scalar_lea.vmem [#allocation2], 1
          %s159 = scalar_lea.sflag [#allocation3], 1
          // Predicated region
          $region37: #{tpu_custom_call.1} parent=31 // pred_check
            _
          $region38: #{tpu_custom_call.1} parent=31 // pred_check_branch
            %161 = sbr.rel target = $region40
          $region39: #{tpu_custom_call.1} parent=31 // pred_region
            %162 = sst [smem:[#allocation12]] [#allocation15]
            %163 = sst [smem:[#allocation13]] [#allocation14]
          $region40: #{tpu_custom_call.1} parent=31 // pred_fallthru
            _
          %165 = shalt.err (0)
          %s167 = sshll.u32 %s158, 4
          %s168 = int_to_ptr.vmem [resolvable:$true] %s167
          %170 = dma.hbm_to_vmem [thread:$0]  %s157, 16, %s168, %s159
          %s171 = sadd.s32 %s139, 2
          %s172 = sld [smem:[#allocation5 + %s171]]
          %s173 = smul.addr %s172, 16
          %s174 = scalar_lea.hbm %s2, %s173
          %s175 = scalar_lea.vmem [#allocation2], 2
          %s176 = scalar_lea.sflag [#allocation3], 2
          // Predicated region
          $region41: #{tpu_custom_call.1} parent=31 // pred_check
            _
          $region42: #{tpu_custom_call.1} parent=31 // pred_check_branch
            %178 = sbr.rel target = $region44
          $region43: #{tpu_custom_call.1} parent=31 // pred_region
            %179 = sst [smem:[#allocation12]] [#allocation17]
            %180 = sst [smem:[#allocation13]] [#allocation16]
          $region44: #{tpu_custom_call.1} parent=31 // pred_fallthru
            _
          %182 = shalt.err (0)
          %s184 = sshll.u32 %s175, 4
          %s185 = int_to_ptr.vmem [resolvable:$true] %s184
          %187 = dma.hbm_to_vmem [thread:$0]  %s174, 16, %s185, %s176
          %s188 = sadd.s32 %s139, 3
          %s189 = sld [smem:[#allocation5 + %s188]]
          %s190 = smul.addr %s189, 16
          %s191 = scalar_lea.hbm %s2, %s190
          %s192 = scalar_lea.vmem [#allocation2], 3
          %s193 = scalar_lea.sflag [#allocation3], 3
          // Predicated region
          $region45: #{tpu_custom_call.1} parent=31 // pred_check
            _
          $region46: #{tpu_custom_call.1} parent=31 // pred_check_branch
            %195 = sbr.rel target = $region48
          $region47: #{tpu_custom_call.1} parent=31 // pred_region
            %196 = sst [smem:[#allocation12]] [#allocation19]
            %197 = sst [smem:[#allocation13]] [#allocation18]
          $region48: #{tpu_custom_call.1} parent=31 // pred_fallthru
            _
          %199 = shalt.err (0)
          %s201 = sshll.u32 %s192, 4
          %s202 = int_to_ptr.vmem [resolvable:$true] %s201
          %204 = dma.hbm_to_vmem [thread:$0]  %s191, 16, %s202, %s193
          %s205 = sadd.s32 %s139, 4
          %s206 = sld [smem:[#allocation5 + %s205]]
          %s207 = smul.addr %s206, 16
          %s208 = scalar_lea.hbm %s2, %s207
          %s209 = scalar_lea.vmem [#allocation2], 4
          %s210 = scalar_lea.sflag [#allocation3], 4
          // Predicated region
          $region49: #{tpu_custom_call.1} parent=31 // pred_check
            _
          $region50: #{tpu_custom_call.1} parent=31 // pred_check_branch
            %212 = sbr.rel target = $region52
          $region51: #{tpu_custom_call.1} parent=31 // pred_region
            %213 = sst [smem:[#allocation12]] [#allocation21]
            %214 = sst [smem:[#allocation13]] [#allocation20]
          $region52: #{tpu_custom_call.1} parent=31 // pred_fallthru
            _
          %216 = shalt.err (0)
          %s218 = sshll.u32 %s209, 4
          %s219 = int_to_ptr.vmem [resolvable:$true] %s218
          %221 = dma.hbm_to_vmem [thread:$0]  %s208, 16, %s219, %s210
          %s222 = sadd.s32 %s139, 5
          %s223 = sld [smem:[#allocation5 + %s222]]
          %s224 = smul.addr %s223, 16
          %s225 = scalar_lea.hbm %s2, %s224
          %s226 = scalar_lea.vmem [#allocation2], 5
          %s227 = scalar_lea.sflag [#allocation3], 5
          // Predicated region
          $region53: #{tpu_custom_call.1} parent=31 // pred_check
            _
          $region54: #{tpu_custom_call.1} parent=31 // pred_check_branch
            %229 = sbr.rel target = $region56
          $region55: #{tpu_custom_call.1} parent=31 // pred_region
            %230 = sst [smem:[#allocation12]] [#allocation23]
            %231 = sst [smem:[#allocation13]] [#allocation22]
          $region56: #{tpu_custom_call.1} parent=31 // pred_fallthru
            _
          %233 = shalt.err (0)
          %s235 = sshll.u32 %s226, 4
          %s236 = int_to_ptr.vmem [resolvable:$true] %s235
          %238 = dma.hbm_to_vmem [thread:$0]  %s225, 16, %s236, %s227
          %s239 = sadd.s32 %s139, 6
          %s240 = sld [smem:[#allocation5 + %s239]]
          %s241 = smul.addr %s240, 16
          %s242 = scalar_lea.hbm %s2, %s241
          %s243 = scalar_lea.vmem [#allocation2], 6
          %s244 = scalar_lea.sflag [#allocation3], 6
          // Predicated region
          $region57: #{tpu_custom_call.1} parent=31 // pred_check
            _
          $region58: #{tpu_custom_call.1} parent=31 // pred_check_branch
            %246 = sbr.rel target = $region60
          $region59: #{tpu_custom_call.1} parent=31 // pred_region
            %247 = sst [smem:[#allocation12]] [#allocation25]
            %248 = sst [smem:[#allocation13]] [#allocation24]
          $region60: #{tpu_custom_call.1} parent=31 // pred_fallthru
            _
          %250 = shalt.err (0)
          %s252 = sshll.u32 %s243, 4
          %s253 = int_to_ptr.vmem [resolvable:$true] %s252
          %255 = dma.hbm_to_vmem [thread:$0]  %s242, 16, %s253, %s244
          %s256 = sadd.s32 %s139, 7
          %s257 = sld [smem:[#allocation5 + %s256]]
          %s258 = smul.addr %s257, 16
          %s259 = scalar_lea.hbm %s2, %s258
          %s260 = scalar_lea.vmem [#allocation2], 7
          %s261 = scalar_lea.sflag [#allocation3], 7
          // Predicated region
          $region61: #{tpu_custom_call.1} parent=31 // pred_check
            _
          $region62: #{tpu_custom_call.1} parent=31 // pred_check_branch
            %263 = sbr.rel target = $region64
          $region63: #{tpu_custom_call.1} parent=31 // pred_region
            %264 = sst [smem:[#allocation12]] [#allocation27]
            %265 = sst [smem:[#allocation13]] [#allocation26]
          $region64: #{tpu_custom_call.1} parent=31 // pred_fallthru
            _
          %267 = shalt.err (0)
          %s269 = sshll.u32 %s260, 4
          %s270 = int_to_ptr.vmem [resolvable:$true] %s269
          %272 = dma.hbm_to_vmem [thread:$0]  %s259, 16, %s270, %s261
        $region32: #{tpu_custom_call.1} parent=23 // pred_fallthru
          _
        %s273 = sadd.s32 %s27, 1
        %p274 = scmp.lt.s32.totalorder %s273, 1
        // Predicated region
        $region65: #{tpu_custom_call.1} parent=23 // pred_check
          %p275 = pneg %p274
        $region66: #{tpu_custom_call.1} parent=23 // pred_check_branch
          %277 = sbr.rel (%p275) target = $region68
        $region67: #{tpu_custom_call.1} parent=23 // pred_region
          %p278 = scmp.lt.s32.totalorder %s273, 0
          %s279 = ssub.s32 0, %s273
          %s280 = scalar_select %p278, %s279, %s273
          %s281 = sand.u32 %s280, 1
          %s282 = ssub.s32 0, %s281
          %s283 = scalar_select %p278, %s282, %s281
          %p284 = scmp.ne.s32.totalorder %s283, 0
          %p285 = scmp.lt.s32.totalorder %s283, 0
          %p286 = pnand %p285, %p284
          %p287 = pneg %p286
          %s288 = sadd.s32 %s283, 2
          %s289 = scalar_select %p287, %s288, %s283
          %s290 = smul.u32 %s26, 8
          %s291 = smul.u32 %s273, 8
          %s292 = sadd.s32 %s290, %s291
          %s293 = sld [smem:[#allocation5 + %s292]]
          %s294 = smul.addr %s293, 16
          %s295 = scalar_lea.hbm %s2, %s294
          %s296 = smul.u32 %s289, 8
          %s297 = scalar_lea.vmem [#allocation2], %s296
          %s298 = scalar_lea.sflag [#allocation3], %s296
          // Predicated region
          $region69: #{tpu_custom_call.1} parent=67 // pred_check
            _
          $region70: #{tpu_custom_call.1} parent=67 // pred_check_branch
            %300 = sbr.rel target = $region72
          $region71: #{tpu_custom_call.1} parent=67 // pred_region
            %301 = sst [smem:[#allocation12]] [#allocation29]
            %302 = sst [smem:[#allocation13]] [#allocation28]
          $region72: #{tpu_custom_call.1} parent=67 // pred_fallthru
            _
          %304 = shalt.err (0)
          %s306 = sshll.u32 %s297, 4
          %s307 = int_to_ptr.vmem [resolvable:$true] %s306
          %309 = dma.hbm_to_vmem [thread:$0]  %s295, 16, %s307, %s298
          %s310 = sadd.s32 %s292, 1
          %s311 = sld [smem:[#allocation5 + %s310]]
          %s312 = smul.addr %s311, 16
          %s313 = scalar_lea.hbm %s2, %s312
          %s314 = sadd.s32 1, %s296
          %s315 = scalar_lea.vmem [#allocation2], %s314
          %s316 = scalar_lea.sflag [#allocation3], %s314
          // Predicated region
          $region73: #{tpu_custom_call.1} parent=67 // pred_check
            _
          $region74: #{tpu_custom_call.1} parent=67 // pred_check_branch
            %318 = sbr.rel target = $region76
          $region75: #{tpu_custom_call.1} parent=67 // pred_region
            %319 = sst [smem:[#allocation12]] [#allocation31]
            %320 = sst [smem:[#allocation13]] [#allocation30]
          $region76: #{tpu_custom_call.1} parent=67 // pred_fallthru
            _
          %322 = shalt.err (0)
          %s324 = sshll.u32 %s315, 4
          %s325 = int_to_ptr.vmem [resolvable:$true] %s324
          %327 = dma.hbm_to_vmem [thread:$0]  %s313, 16, %s325, %s316
          %s328 = sadd.s32 %s292, 2
          %s329 = sld [smem:[#allocation5 + %s328]]
          %s330 = smul.addr %s329, 16
          %s331 = scalar_lea.hbm %s2, %s330
          %s332 = sadd.s32 2, %s296
          %s333 = scalar_lea.vmem [#allocation2], %s332
          %s334 = scalar_lea.sflag [#allocation3], %s332
          // Predicated region
          $region77: #{tpu_custom_call.1} parent=67 // pred_check
            _
          $region78: #{tpu_custom_call.1} parent=67 // pred_check_branch
            %336 = sbr.rel target = $region80
          $region79: #{tpu_custom_call.1} parent=67 // pred_region
            %337 = sst [smem:[#allocation12]] [#allocation33]
            %338 = sst [smem:[#allocation13]] [#allocation32]
          $region80: #{tpu_custom_call.1} parent=67 // pred_fallthru
            _
          %340 = shalt.err (0)
          %s342 = sshll.u32 %s333, 4
          %s343 = int_to_ptr.vmem [resolvable:$true] %s342
          %345 = dma.hbm_to_vmem [thread:$0]  %s331, 16, %s343, %s334
          %s346 = sadd.s32 %s292, 3
          %s347 = sld [smem:[#allocation5 + %s346]]
          %s348 = smul.addr %s347, 16
          %s349 = scalar_lea.hbm %s2, %s348
          %s350 = sadd.s32 3, %s296
          %s351 = scalar_lea.vmem [#allocation2], %s350
          %s352 = scalar_lea.sflag [#allocation3], %s350
          // Predicated region
          $region81: #{tpu_custom_call.1} parent=67 // pred_check
            _
          $region82: #{tpu_custom_call.1} parent=67 // pred_check_branch
            %354 = sbr.rel target = $region84
          $region83: #{tpu_custom_call.1} parent=67 // pred_region
            %355 = sst [smem:[#allocation12]] [#allocation35]
            %356 = sst [smem:[#allocation13]] [#allocation34]
          $region84: #{tpu_custom_call.1} parent=67 // pred_fallthru
            _
          %358 = shalt.err (0)
          %s360 = sshll.u32 %s351, 4
          %s361 = int_to_ptr.vmem [resolvable:$true] %s360
          %363 = dma.hbm_to_vmem [thread:$0]  %s349, 16, %s361, %s352
          %s364 = sadd.s32 %s292, 4
          %s365 = sld [smem:[#allocation5 + %s364]]
          %s366 = smul.addr %s365, 16
          %s367 = scalar_lea.hbm %s2, %s366
          %s368 = sadd.s32 4, %s296
          %s369 = scalar_lea.vmem [#allocation2], %s368
          %s370 = scalar_lea.sflag [#allocation3], %s368
          // Predicated region
          $region85: #{tpu_custom_call.1} parent=67 // pred_check
            _
          $region86: #{tpu_custom_call.1} parent=67 // pred_check_branch
            %372 = sbr.rel target = $region88
          $region87: #{tpu_custom_call.1} parent=67 // pred_region
            %373 = sst [smem:[#allocation12]] [#allocation37]
            %374 = sst [smem:[#allocation13]] [#allocation36]
          $region88: #{tpu_custom_call.1} parent=67 // pred_fallthru
            _
          %376 = shalt.err (0)
          %s378 = sshll.u32 %s369, 4
          %s379 = int_to_ptr.vmem [resolvable:$true] %s378
          %381 = dma.hbm_to_vmem [thread:$0]  %s367, 16, %s379, %s370
          %s382 = sadd.s32 %s292, 5
          %s383 = sld [smem:[#allocation5 + %s382]]
          %s384 = smul.addr %s383, 16
          %s385 = scalar_lea.hbm %s2, %s384
          %s386 = sadd.s32 5, %s296
          %s387 = scalar_lea.vmem [#allocation2], %s386
          %s388 = scalar_lea.sflag [#allocation3], %s386
          // Predicated region
          $region89: #{tpu_custom_call.1} parent=67 // pred_check
            _
          $region90: #{tpu_custom_call.1} parent=67 // pred_check_branch
            %390 = sbr.rel target = $region92
          $region91: #{tpu_custom_call.1} parent=67 // pred_region
            %391 = sst [smem:[#allocation12]] [#allocation39]
            %392 = sst [smem:[#allocation13]] [#allocation38]
          $region92: #{tpu_custom_call.1} parent=67 // pred_fallthru
            _
          %394 = shalt.err (0)
          %s396 = sshll.u32 %s387, 4
          %s397 = int_to_ptr.vmem [resolvable:$true] %s396
          %399 = dma.hbm_to_vmem [thread:$0]  %s385, 16, %s397, %s388
          %s400 = sadd.s32 %s292, 6
          %s401 = sld [smem:[#allocation5 + %s400]]
          %s402 = smul.addr %s401, 16
          %s403 = scalar_lea.hbm %s2, %s402
          %s404 = sadd.s32 6, %s296
          %s405 = scalar_lea.vmem [#allocation2], %s404
          %s406 = scalar_lea.sflag [#allocation3], %s404
          // Predicated region
          $region93: #{tpu_custom_call.1} parent=67 // pred_check
            _
          $region94: #{tpu_custom_call.1} parent=67 // pred_check_branch
            %408 = sbr.rel target = $region96
          $region95: #{tpu_custom_call.1} parent=67 // pred_region
            %409 = sst [smem:[#allocation12]] [#allocation41]
            %410 = sst [smem:[#allocation13]] [#allocation40]
          $region96: #{tpu_custom_call.1} parent=67 // pred_fallthru
            _
          %412 = shalt.err (0)
          %s414 = sshll.u32 %s405, 4
          %s415 = int_to_ptr.vmem [resolvable:$true] %s414
          %417 = dma.hbm_to_vmem [thread:$0]  %s403, 16, %s415, %s406
          %s418 = sadd.s32 %s292, 7
          %s419 = sld [smem:[#allocation5 + %s418]]
          %s420 = smul.addr %s419, 16
          %s421 = scalar_lea.hbm %s2, %s420
          %s422 = sadd.s32 7, %s296
          %s423 = scalar_lea.vmem [#allocation2], %s422
          %s424 = scalar_lea.sflag [#allocation3], %s422
          // Predicated region
          $region97: #{tpu_custom_call.1} parent=67 // pred_check
            _
          $region98: #{tpu_custom_call.1} parent=67 // pred_check_branch
            %426 = sbr.rel target = $region100
          $region99: #{tpu_custom_call.1} parent=67 // pred_region
            %427 = sst [smem:[#allocation12]] [#allocation43]
            %428 = sst [smem:[#allocation13]] [#allocation42]
          $region100: #{tpu_custom_call.1} parent=67 // pred_fallthru
            _
          %430 = shalt.err (0)
          %s432 = sshll.u32 %s423, 4
          %s433 = int_to_ptr.vmem [resolvable:$true] %s432
          %435 = dma.hbm_to_vmem [thread:$0]  %s421, 16, %s433, %s424
        $region68: #{tpu_custom_call.1} parent=23 // pred_fallthru
          _
        %p436 = scmp.lt.s32.totalorder %s27, 0
        %s437 = ssub.s32 0, %s27
        %s438 = scalar_select %p436, %s437, %s27
        %s439 = sand.u32 %s438, 1
        %s440 = ssub.s32 0, %s439
        %s441 = scalar_select %p436, %s440, %s439
        %p442 = scmp.ne.s32.totalorder %s441, 0
        %p443 = scmp.lt.s32.totalorder %s441, 0
        %p444 = pnand %p443, %p442
        %p445 = pneg %p444
        %s446 = sadd.s32 %s441, 2
        %s447 = scalar_select %p445, %s446, %s441
        %s448 = smul.u32 %s447, 8
        %s449 = scalar_lea.sflag [#allocation3], %s448
        %451 = dma.done %s449, 16
        %s452 = sadd.s32 1, %s448
        %s453 = scalar_lea.sflag [#allocation3], %s452
        %455 = dma.done %s453, 16
        %s456 = sadd.s32 2, %s448
        %s457 = scalar_lea.sflag [#allocation3], %s456
        %459 = dma.done %s457, 16
        %s460 = sadd.s32 3, %s448
        %s461 = scalar_lea.sflag [#allocation3], %s460
        %463 = dma.done %s461, 16
        %s464 = sadd.s32 4, %s448
        %s465 = scalar_lea.sflag [#allocation3], %s464
        %467 = dma.done %s465, 16
        %s468 = sadd.s32 5, %s448
        %s469 = scalar_lea.sflag [#allocation3], %s468
        %471 = dma.done %s469, 16
        %s472 = sadd.s32 6, %s448
        %s473 = scalar_lea.sflag [#allocation3], %s472
        %475 = dma.done %s473, 16
        %s476 = sadd.s32 7, %s448
        %s477 = scalar_lea.sflag [#allocation3], %s476
        %479 = dma.done %s477, 16
        %s480 = scalar_lea.vmem [#allocation2], %s448
        %v481 = vld [vmem:[%s480] sm:$0xff]
        %v482 = vld [vmem:[#allocation6] sm:$0xff]
        %v483 = vadd.f32 %v481, %v482
        %484 = vst [vmem:[%s134] sm:$0xff] %v483
        %s485 = sand.u32 %s70, 1
        %s486 = scalar_lea.sflag [#allocation8], %s485
        %s487 = sand.u32 %s70, 1
        %s488 = smul.addr %s487, 8
        %s489 = scalar_lea.vmem [#allocation9], %s488
        // Predicated region
        $region101: #{tpu_custom_call.1} parent=23 // pred_check
          %p490 = pneg %p80
        $region102: #{tpu_custom_call.1} parent=23 // pred_check_branch
          %492 = sbr.rel (%p490) target = $region104
        $region103: #{tpu_custom_call.1} parent=23 // pred_region
          %s494 = ssub.s32 128, 128
          %495 = vsyncadd %s486, %s494
          %s496 = sadd.s32 %s27, %s26
          %s497 = smul.addr %s496, 128
          %s498 = scalar_lea.hbm %s3, %s497
          %s500 = sshll.u32 %s489, 4
          %s501 = int_to_ptr.vmem [resolvable:$true] %s500
          %503 = dma.vmem_to_hbm [thread:$0]  %s501, 128, %s498, %s486
        $region104: #{tpu_custom_call.1} parent=23 // pred_fallthru
          _
      $region24: #{tpu_custom_call.1} parent=5 // pred_fallthru
        _
      %p504 = scmp.le.s32.totalorder 2, %s17
      // Predicated region
      $region105: #{tpu_custom_call.1} parent=5 // pred_check
        %p505 = pneg %p504
      $region106: #{tpu_custom_call.1} parent=5 // pred_check_branch
        %507 = sbr.rel (%p505) target = $region108
      $region107: #{tpu_custom_call.1} parent=5 // pred_region
        %s508 = ssub.s32 %s17, 2
        // Predicated region
        $region109: #{tpu_custom_call.1} parent=107 // pred_check
          %p509 = pneg %p86
        $region110: #{tpu_custom_call.1} parent=107 // pred_check_branch
          %511 = sbr.rel (%p509) target = $region112
        $region111: #{tpu_custom_call.1} parent=107 // pred_region
          %s512 = sand.u32 %s71, 1
          %s513 = scalar_lea.sflag [#allocation8], %s512
          %s514 = sand.u32 %s71, 1
          %s515 = smul.addr %s514, 8
          %s516 = scalar_lea.vmem [#allocation9], %s515
          %517 = dma.done %s513, 128
        $region112: #{tpu_custom_call.1} parent=107 // pred_fallthru
          _
      $region108: #{tpu_custom_call.1} parent=5 // pred_fallthru
        _
    $region6: #{tpu_custom_call.1} parent=1 // loop_footer
      %s21 = sadd.s32 1, %s17
    $region7: #{tpu_custom_call.1} parent=1 // loop_footer_branch
      %16 = sbr.rel target = $region3
    $region8: #{tpu_custom_call.1} parent=1 // loop_exit
      _
    %518 = vsyncpa [#allocation7], 1
    %s519 = scalar_lea.sflag [#allocation7], 1
    %520 = vsyncpa %s519, 1
    %521 = vsyncpa [#allocation8], 1
    %s522 = scalar_lea.sflag [#allocation8], 1
    %523 = vsyncpa %s522, 1
  %524 = vsyncmov [#allocation3]
  %s525 = vpop.sfrf %524
  %p526 = scmp.eq.s32.totalorder %s525, 0
  %p527 = pneg %p526
  %529 = shalt.err (%p527)
  %s530 = scalar_lea.sflag [#allocation3], 1
  %531 = vsyncmov %s530
  %s532 = vpop.sfrf %531
  %p533 = scmp.eq.s32.totalorder %s532, 0
  %p534 = pneg %p533
  %536 = shalt.err (%p534)
  %s537 = scalar_lea.sflag [#allocation3], 2
  %538 = vsyncmov %s537
  %s539 = vpop.sfrf %538
  %p540 = scmp.eq.s32.totalorder %s539, 0
  %p541 = pneg %p540
  %543 = shalt.err (%p541)
  %s544 = scalar_lea.sflag [#allocation3], 3
  %545 = vsyncmov %s544
  %s546 = vpop.sfrf %545
  %p547 = scmp.eq.s32.totalorder %s546, 0
  %p548 = pneg %p547
  %550 = shalt.err (%p548)
  %s551 = scalar_lea.sflag [#allocation3], 4
  %552 = vsyncmov %s551
  %s553 = vpop.sfrf %552
  %p554 = scmp.eq.s32.totalorder %s553, 0
  %p555 = pneg %p554
  %557 = shalt.err (%p555)
  %s558 = scalar_lea.sflag [#allocation3], 5
  %559 = vsyncmov %s558
  %s560 = vpop.sfrf %559
  %p561 = scmp.eq.s32.totalorder %s560, 0
  %p562 = pneg %p561
  %564 = shalt.err (%p562)
  %s565 = scalar_lea.sflag [#allocation3], 6
  %566 = vsyncmov %s565
  %s567 = vpop.sfrf %566
  %p568 = scmp.eq.s32.totalorder %s567, 0
  %p569 = pneg %p568
  %571 = shalt.err (%p569)
  %s572 = scalar_lea.sflag [#allocation3], 7
  %573 = vsyncmov %s572
  %s574 = vpop.sfrf %573
  %p575 = scmp.eq.s32.totalorder %s574, 0
  %p576 = pneg %p575
  %578 = shalt.err (%p576)
  %s579 = scalar_lea.sflag [#allocation3], 8
  %580 = vsyncmov %s579
  %s581 = vpop.sfrf %580
  %p582 = scmp.eq.s32.totalorder %s581, 0
  %p583 = pneg %p582
  %585 = shalt.err (%p583)
  %s586 = scalar_lea.sflag [#allocation3], 9
  %587 = vsyncmov %s586
  %s588 = vpop.sfrf %587
  %p589 = scmp.eq.s32.totalorder %s588, 0
  %p590 = pneg %p589
  %592 = shalt.err (%p590)
  %s593 = scalar_lea.sflag [#allocation3], 10
  %594 = vsyncmov %s593
  %s595 = vpop.sfrf %594
  %p596 = scmp.eq.s32.totalorder %s595, 0
  %p597 = pneg %p596
  %599 = shalt.err (%p597)
  %s600 = scalar_lea.sflag [#allocation3], 11
  %601 = vsyncmov %s600
  %s602 = vpop.sfrf %601
  %p603 = scmp.eq.s32.totalorder %s602, 0
  %p604 = pneg %p603
  %606 = shalt.err (%p604)
  %s607 = scalar_lea.sflag [#allocation3], 12
  %608 = vsyncmov %s607
  %s609 = vpop.sfrf %608
  %p610 = scmp.eq.s32.totalorder %s609, 0
  %p611 = pneg %p610
  %613 = shalt.err (%p611)
  %s614 = scalar_lea.sflag [#allocation3], 13
  %615 = vsyncmov %s614
  %s616 = vpop.sfrf %615
  %p617 = scmp.eq.s32.totalorder %s616, 0
  %p618 = pneg %p617
  %620 = shalt.err (%p618)
  %s621 = scalar_lea.sflag [#allocation3], 14
  %622 = vsyncmov %s621
  %s623 = vpop.sfrf %622
  %p624 = scmp.eq.s32.totalorder %s623, 0
  %p625 = pneg %p624
  %627 = shalt.err (%p625)
  %s628 = scalar_lea.sflag [#allocation3], 15
  %629 = vsyncmov %s628
  %s630 = vpop.sfrf %629
  %p631 = scmp.eq.s32.totalorder %s630, 0
  %p632 = pneg %p631
  %634 = shalt.err (%p632)

</llo_original>
